<compile_context>
chip_gen: v7x
topology: tpu7x:2x2x1
jax: 0.10.0
libtpu: 0.0.40
codegen_flags: <defaults>
</compile_context>

<pallas_src>
import math

import jax
import jax.numpy as jnp
from jax import lax
from jax.experimental import pallas as pl
from jax.experimental.pallas import tpu as pltpu

# ---- model hyper-params (small, consistent with the module) ----
B = 2        # batch
S = 8        # seq_len
D = 32       # d_model
H = 4        # heads
D_K = D // H # dims per head
D_FF = 64    # feed-forward hidden
EPS = 1e-6
NEG_INF = -1.0e9


def _make_encoder_kernel(n_rows: int):
    """Encoder block over a flattened (n_rows, D) slab; n_rows = (batch-per-step)*S."""

    def kernel(x_ref, bias_ref, w_ref, w2_ref, vec_ref, o_ref):
        x = x_ref[0]            # (n_rows, D)
        bias = bias_ref[0]      # (n_rows, n_rows) additive mask bias (block-diagonal)
        W = w_ref[...]          # (D, 4*D + D_FF):  wq | wk | wv | wo | w1
        V = vec_ref[...]        # (8, 3*D) packed bias / LayerNorm vectors

        bqkv = V[0:1, :]                         # (1, 3*D)  = bq | bk | bv
        bo = V[1:2, 0:D]
        g1, be1 = V[2:3, 0:D], V[3:4, 0:D]
        g2, be2 = V[4:5, 0:D], V[5:6, 0:D]
        b1 = V[6:7, 0:D_FF]
        b2 = V[7:8, 0:D]

        def layer_norm(z, gamma, beta):
            mean = jnp.mean(z, axis=-1, keepdims=True)
            # torch.var(dim=-1) is unbiased (divide by D-1)
            var = jnp.sum((z - mean) ** 2, axis=-1, keepdims=True) * (1.0 / (D - 1))
            return gamma * ((z - mean) * lax.rsqrt(var + EPS)) + beta

        # ---------------- residual connection 1: multi-head self-attention ----
        xn = layer_norm(x, g1, be1)
        qkv = jnp.dot(xn, W[:, 0:3 * D],
                      preferred_element_type=jnp.float32) + bqkv      # (n_rows, 3*D)

        scale = 1.0 / math.sqrt(D_K)
        attn = jnp.zeros((n_rows, D), jnp.float32)
        for h in range(H):                       # static unroll over heads
            qh = qkv[:, h * D_K:(h + 1) * D_K]
            kh = qkv[:, D + h * D_K:D + (h + 1) * D_K]
            vh = qkv[:, 2 * D + h * D_K:2 * D + (h + 1) * D_K]
            # q @ k^T without materializing an explicit transpose
            s = lax.dot_general(qh, kh, (((1,), (1,)), ((), ())),
                                preferred_element_type=jnp.float32) * scale + bias
            s = s - jnp.max(s, axis=-1, keepdims=True)
            p = jnp.exp(s)                       # masked / cross-batch entries underflow to 0
            p = p * pl.reciprocal(jnp.sum(p, axis=-1, keepdims=True), approx=False)
            # TODO(synk): attention dropout skipped (inference / eval semantics)
            head = jnp.dot(p, vh, preferred_element_type=jnp.float32)     # (n_rows, D_K)
            # fold the output projection into the head loop -> no lane concatenate
            wo_h = W[h * D_K:(h + 1) * D_K, 3 * D:4 * D]                  # (D_K, D)
            attn = attn + jnp.dot(head, wo_h, preferred_element_type=jnp.float32)

        x1 = x + attn + bo                       # residual 1

        # ---------------- residual connection 2: position-wise feed forward ---
        xn2 = layer_norm(x1, g2, be2)
        h1 = jnp.dot(xn2, W[:, 4 * D:4 * D + D_FF],
                     preferred_element_type=jnp.float32) + b1
        h1 = jnp.maximum(h1, 0.0)                # ReLU
        ff = jnp.dot(h1, w2_ref[...], preferred_element_type=jnp.float32) + b2

        o_ref[0] = x1 + ff                       # residual 2

    return kernel


def _batch_block_size() -> int:
    """Batch elements per grid step: 1 on v7x (2 TensorCores -> 'parallel' batch
    axis maps one element per core), otherwise the whole batch in one step."""
    try:
        kind = jax.devices()[0].device_kind.lower()
    except Exception:
        return B
    return 1 if ("v7" in kind or "7x" in kind) else B


def pack_params(params):
    """Pack 16 small parameter arrays into 3 slabs (fewer DMA descriptors)."""
    (wq, bq, wk, bk, wv, bv, wo, bo,
     g1, be1, g2, be2, w1, b1, w2, b2) = params
    w_all = jnp.concatenate([wq, wk, wv, wo, w1], axis=1)       # (D, 4*D + D_FF)
    width = 3 * D
    pad = lambda v: jnp.pad(v, ((0, 0), (0, width - v.shape[1])))
    vec = jnp.concatenate(
        [jnp.concatenate([bq, bk, bv], axis=1),                 # row 0: (1, 3*D)
         pad(bo), pad(g1), pad(be1), pad(g2), pad(be2),
         pad(b1), pad(b2)], axis=0)                             # (8, 3*D)
    return w_all, w2, vec


def _mask_bias(src_mask, bb):
    """(G, bb*S, bb*S) additive mask bias.  Within-batch masked positions and
    cross-batch positions (when bb > 1) get -1e9; everything else 0.  This is a
    layout transform that lets the attention run on the flattened (bb*S) rows."""
    g = B // bb
    bias = jnp.where(src_mask == 0, NEG_INF, 0.0).astype(jnp.float32)   # (B, S, S)
    bias = bias.reshape(g, bb, S, S)
    big = jnp.full((g, bb * S, bb * S), NEG_INF, jnp.float32)
    for j in range(bb):
        big = big.at[:, j * S:(j + 1) * S, j * S:(j + 1) * S].set(bias[:, j])
    return big


def encoder_block(x, src_mask, params):
    """x: (B, S, D) f32;  src_mask: (B, S, S) int32 (0 = masked)."""
    bb = _batch_block_size()
    g = B // bb
    n = bb * S

    w_all, w2, vec = pack_params(params)
    bias = _mask_bias(src_mask, bb)
    x2 = x.reshape(g, n, D)                      # contiguous -> free host reshape

    full = lambda shape: pl.BlockSpec(shape, lambda i: tuple(0 for _ in shape))

    out = pl.pallas_call(
        _make_encoder_kernel(n),
        out_shape=jax.ShapeDtypeStruct((g, n, D), jnp.float32),
        grid=(g,),
        in_specs=[
            pl.BlockSpec((1, n, D), lambda i: (i, 0, 0)),   # x slab
            pl.BlockSpec((1, n, n), lambda i: (i, 0, 0)),   # mask bias slab
            full((D, 4 * D + D_FF)),                        # packed weights
            full((D_FF, D)),                                # w2
            full((8, 3 * D)),                               # packed vectors
        ],
        out_specs=pl.BlockSpec((1, n, D), lambda i: (i, 0, 0)),
        compiler_params=pltpu.CompilerParams(
            dimension_semantics=("parallel",)),
    )(x2, bias, w_all, w2, vec)
    return out.reshape(B, S, D)


def encoder_block_ref(x, src_mask, params):
    """Pure-JAX reference with identical semantics (for correctness check)."""
    (wq, bq, wk, bk, wv, bv, wo, bo,
     g1, be1, g2, be2, w1, b1, w2, b2) = params

    def layer_norm(z, gamma, beta):
        mean = jnp.mean(z, axis=-1, keepdims=True)
        var = jnp.sum((z - mean) ** 2, axis=-1, keepdims=True) / (D - 1)
        return gamma[0] * ((z - mean) / jnp.sqrt(var + EPS)) + beta[0]

    xn = layer_norm(x, g1, be1)
    q = xn @ wq + bq[0]
    k = xn @ wk + bk[0]
    v = xn @ wv + bv[0]
    q = q.reshape(B, S, H, D_K).transpose(0, 2, 1, 3)
    k = k.reshape(B, S, H, D_K).transpose(0, 2, 1, 3)
    v = v.reshape(B, S, H, D_K).transpose(0, 2, 1, 3)
    scores = jnp.einsum("bhqd,bhkd->bhqk", q, k) / math.sqrt(D_K)
    scores = jnp.where(src_mask[:, None, :, :] == 0, NEG_INF, scores)
    p = jax.nn.softmax(scores, axis=-1)
    attn = jnp.einsum("bhqk,bhkd->bhqd", p, v)
    attn = attn.transpose(0, 2, 1, 3).reshape(B, S, D)
    x1 = x + (attn @ wo + bo[0])

    xn2 = layer_norm(x1, g2, be2)
    ff = jnp.maximum(xn2 @ w1 + b1[0], 0.0) @ w2 + b2[0]
    return x1 + ff


def make_params(key):
    ks = jax.random.split(key, 12)
    scale = 1.0 / math.sqrt(D)
    wq = jax.random.normal(ks[0], (D, D), jnp.float32) * scale
    wk = jax.random.normal(ks[1], (D, D), jnp.float32) * scale
    wv = jax.random.normal(ks[2], (D, D), jnp.float32) * scale
    wo = jax.random.normal(ks[3], (D, D), jnp.float32) * scale
    bq = jax.random.normal(ks[4], (1, D), jnp.float32) * 0.01
    bk = jax.random.normal(ks[5], (1, D), jnp.float32) * 0.01
    bv = jax.random.normal(ks[6], (1, D), jnp.float32) * 0.01
    bo = jax.random.normal(ks[7], (1, D), jnp.float32) * 0.01
    g1 = jnp.ones((1, D), jnp.float32)
    be1 = jnp.zeros((1, D), jnp.float32)
    g2 = jnp.ones((1, D), jnp.float32)
    be2 = jnp.zeros((1, D), jnp.float32)
    w1 = jax.random.normal(ks[8], (D, D_FF), jnp.float32) * scale
    b1 = jax.random.normal(ks[9], (1, D_FF), jnp.float32) * 0.01
    w2 = jax.random.normal(ks[10], (D_FF, D), jnp.float32) * (1.0 / math.sqrt(D_FF))
    b2 = jax.random.normal(ks[11], (1, D), jnp.float32) * 0.01
    return (wq, bq, wk, bk, wv, bv, wo, bo, g1, be1, g2, be2, w1, b1, w2, b2)


if __name__ == "__main__":
    key = jax.random.PRNGKey(0)
    k_x, k_p = jax.random.split(key)

    x = jax.random.normal(k_x, (B, S, D), jnp.float32)
    # padding mask: batch 0 fully valid, batch 1 has its last 2 positions padded
    valid_len = jnp.array([S, S - 2])
    col = jnp.arange(S)[None, None, :]
    src_mask = (col < valid_len[:, None, None]).astype(jnp.int32)    # (B, 1, S)
    src_mask = jnp.broadcast_to(src_mask, (B, S, S)).astype(jnp.int32)

    params = make_params(k_p)

    out = encoder_block(x, src_mask, params)
    out = jax.block_until_ready(out)

    ref = encoder_block_ref(x, src_mask, params)
    assert out.shape == (B, S, D)
    assert jnp.allclose(out, ref, atol=1e-4, rtol=1e-4), "mismatch vs JAX reference"

    print("KERNEL_OK")
</pallas_src>

<mosaic_0001>
module attributes {stable_mosaic.version = 11 : i64} {
  func.func @kernel(%arg0: i32, %arg1: memref<1x16x32xf32, #tpu.memory_space<vmem>>, %arg2: memref<1x16x16xf32, #tpu.memory_space<vmem>>, %arg3: memref<32x192xf32, #tpu.memory_space<vmem>>, %arg4: memref<64x32xf32, #tpu.memory_space<vmem>>, %arg5: memref<8x96xf32, #tpu.memory_space<vmem>>, %arg6: memref<1x16x32xf32, #tpu.memory_space<vmem>>) attributes {dimension_semantics = [#tpu.dimension_semantics<parallel>], iteration_bounds = array<i64: 1>, scalar_prefetch = 0 : i64, scratch_operands = 0 : i64, tpu.core_type = #tpu.core_type<tc>, window_params = [{transform_indices = @transform_0, window_bounds = array<i64: 1, 16, 32>}, {transform_indices = @transform_1, window_bounds = array<i64: 1, 16, 16>}, {pipeline_mode = #tpu.pipeline_mode<synchronous>, transform_indices = @transform_2, window_bounds = array<i64: 32, 192>}, {pipeline_mode = #tpu.pipeline_mode<synchronous>, transform_indices = @transform_3, window_bounds = array<i64: 64, 32>}, {pipeline_mode = #tpu.pipeline_mode<synchronous>, transform_indices = @transform_4, window_bounds = array<i64: 8, 96>}, {transform_indices = @transform_5, window_bounds = array<i64: 1, 16, 32>}]} {
    %c0 = arith.constant 0 : index
    %c0_0 = arith.constant 0 : index
    %c0_1 = arith.constant 0 : index
    %0 = vector.load %arg1[%c0, %c0_0, %c0_1] : memref<1x16x32xf32, #tpu.memory_space<vmem>>, vector<1x16x32xf32>
    %1 = vector.shape_cast %0 : vector<1x16x32xf32> to vector<16x32xf32>
    %c0_2 = arith.constant 0 : index
    %c0_3 = arith.constant 0 : index
    %c0_4 = arith.constant 0 : index
    %2 = vector.load %arg2[%c0_2, %c0_3, %c0_4] : memref<1x16x16xf32, #tpu.memory_space<vmem>>, vector<1x16x16xf32>
    %3 = vector.shape_cast %2 : vector<1x16x16xf32> to vector<16x16xf32>
    %c0_5 = arith.constant 0 : index
    %c0_6 = arith.constant 0 : index
    %4 = vector.load %arg3[%c0_5, %c0_6] : memref<32x192xf32, #tpu.memory_space<vmem>>, vector<32x192xf32>
    %c0_7 = arith.constant 0 : index
    %c0_8 = arith.constant 0 : index
    %5 = vector.load %arg5[%c0_7, %c0_8] : memref<8x96xf32, #tpu.memory_space<vmem>>, vector<8x96xf32>
    %6 = vector.extract_strided_slice %5 {offsets = [0, 0], sizes = [1, 96], strides = [1, 1]} : vector<8x96xf32> to vector<1x96xf32>
    %7 = vector.extract_strided_slice %5 {offsets = [1, 0], sizes = [1, 32], strides = [1, 1]} : vector<8x96xf32> to vector<1x32xf32>
    %8 = vector.extract_strided_slice %5 {offsets = [2, 0], sizes = [1, 32], strides = [1, 1]} : vector<8x96xf32> to vector<1x32xf32>
    %9 = vector.extract_strided_slice %5 {offsets = [3, 0], sizes = [1, 32], strides = [1, 1]} : vector<8x96xf32> to vector<1x32xf32>
    %10 = vector.extract_strided_slice %5 {offsets = [4, 0], sizes = [1, 32], strides = [1, 1]} : vector<8x96xf32> to vector<1x32xf32>
    %11 = vector.extract_strided_slice %5 {offsets = [5, 0], sizes = [1, 32], strides = [1, 1]} : vector<8x96xf32> to vector<1x32xf32>
    %12 = vector.extract_strided_slice %5 {offsets = [6, 0], sizes = [1, 64], strides = [1, 1]} : vector<8x96xf32> to vector<1x64xf32>
    %13 = vector.extract_strided_slice %5 {offsets = [7, 0], sizes = [1, 32], strides = [1, 1]} : vector<8x96xf32> to vector<1x32xf32>
    %cst = arith.constant dense<0.000000e+00> : vector<16xf32>
    %14 = vector.multi_reduction <add>, %1, %cst [1] : vector<16x32xf32> to vector<16xf32>
    %15 = vector.shape_cast %14 : vector<16xf32> to vector<16x1xf32>
    %cst_9 = arith.constant 3.200000e+01 : f32
    %16 = vector.broadcast %cst_9 : f32 to vector<16x1xf32>
    %17 = arith.divf %15, %16 : vector<16x1xf32>
    %18 = vector.broadcast %17 : vector<16x1xf32> to vector<16x32xf32>
    %19 = arith.subf %1, %18 : vector<16x32xf32>
    %20 = arith.mulf %19, %19 : vector<16x32xf32>
    %cst_10 = arith.constant dense<0.000000e+00> : vector<16xf32>
    %21 = vector.multi_reduction <add>, %20, %cst_10 [1] : vector<16x32xf32> to vector<16xf32>
    %22 = vector.shape_cast %21 : vector<16xf32> to vector<16x1xf32>
    %cst_11 = arith.constant 0.0322580636 : f32
    %23 = vector.broadcast %cst_11 : f32 to vector<16x1xf32>
    %24 = arith.mulf %22, %23 : vector<16x1xf32>
    %25 = vector.broadcast %17 : vector<16x1xf32> to vector<16x32xf32>
    %26 = arith.subf %1, %25 : vector<16x32xf32>
    %cst_12 = arith.constant 9.99999997E-7 : f32
    %27 = vector.broadcast %cst_12 : f32 to vector<16x1xf32>
    %28 = arith.addf %24, %27 : vector<16x1xf32>
    %29 = math.rsqrt %28 : vector<16x1xf32>
    %30 = vector.broadcast %29 : vector<16x1xf32> to vector<16x32xf32>
    %31 = arith.mulf %26, %30 : vector<16x32xf32>
    %32 = vector.broadcast %8 : vector<1x32xf32> to vector<16x32xf32>
    %33 = arith.mulf %32, %31 : vector<16x32xf32>
    %34 = vector.broadcast %9 : vector<1x32xf32> to vector<16x32xf32>
    %35 = arith.addf %33, %34 : vector<16x32xf32>
    %36 = vector.extract_strided_slice %4 {offsets = [0, 0], sizes = [32, 96], strides = [1, 1]} : vector<32x192xf32> to vector<32x96xf32>
    %cst_13 = arith.constant dense<0.000000e+00> : vector<16x96xf32>
    %37 = tpu.matmul %35, %36, %cst_13 {dimension_numbers = #tpu.dot_dimension_numbers<[1], [0], [0], [1], [0, 0, 1, 1], [], []>} : vector<16x32xf32>, vector<32x96xf32>, vector<16x96xf32> -> vector<16x96xf32>
    %38 = vector.broadcast %6 : vector<1x96xf32> to vector<16x96xf32>
    %39 = arith.addf %37, %38 : vector<16x96xf32>
    %cst_14 = arith.constant 0.000000e+00 : f32
    %40 = vector.broadcast %cst_14 : f32 to vector<16x32xf32>
    %41 = vector.extract_strided_slice %39 {offsets = [0, 0], sizes = [16, 8], strides = [1, 1]} : vector<16x96xf32> to vector<16x8xf32>
    %42 = vector.extract_strided_slice %39 {offsets = [0, 32], sizes = [16, 8], strides = [1, 1]} : vector<16x96xf32> to vector<16x8xf32>
    %43 = vector.extract_strided_slice %39 {offsets = [0, 64], sizes = [16, 8], strides = [1, 1]} : vector<16x96xf32> to vector<16x8xf32>
    %cst_15 = arith.constant dense<0.000000e+00> : vector<16x16xf32>
    %44 = tpu.matmul %41, %42, %cst_15 {dimension_numbers = #tpu.dot_dimension_numbers<[1], [1], [0], [0], [0, 0, 1, 0], [], []>} : vector<16x8xf32>, vector<16x8xf32>, vector<16x16xf32> -> vector<16x16xf32>
    %cst_16 = arith.constant 0.353553385 : f32
    %45 = vector.broadcast %cst_16 : f32 to vector<16x16xf32>
    %46 = arith.mulf %44, %45 : vector<16x16xf32>
    %47 = arith.addf %46, %3 : vector<16x16xf32>
    %cst_17 = arith.constant dense<0xFF800000> : vector<16xf32>
    %48 = vector.multi_reduction <maximumf>, %47, %cst_17 [1] : vector<16x16xf32> to vector<16xf32>
    %49 = vector.shape_cast %48 : vector<16xf32> to vector<16x1xf32>
    %50 = vector.broadcast %49 : vector<16x1xf32> to vector<16x16xf32>
    %51 = arith.subf %47, %50 : vector<16x16xf32>
    %52 = math.exp %51 : vector<16x16xf32>
    %cst_18 = arith.constant dense<0.000000e+00> : vector<16xf32>
    %53 = vector.multi_reduction <add>, %52, %cst_18 [1] : vector<16x16xf32> to vector<16xf32>
    %54 = vector.shape_cast %53 : vector<16xf32> to vector<16x1xf32>
    %55 = tpu.reciprocal %54 : vector<16x1xf32> -> vector<16x1xf32>
    %56 = vector.broadcast %55 : vector<16x1xf32> to vector<16x16xf32>
    %57 = arith.mulf %52, %56 : vector<16x16xf32>
    %cst_19 = arith.constant dense<0.000000e+00> : vector<16x8xf32>
    %58 = tpu.matmul %57, %43, %cst_19 {dimension_numbers = #tpu.dot_dimension_numbers<[1], [0], [0], [1], [0, 0, 1, 1], [], []>} : vector<16x16xf32>, vector<16x8xf32>, vector<16x8xf32> -> vector<16x8xf32>
    %59 = vector.extract_strided_slice %4 {offsets = [0, 96], sizes = [8, 32], strides = [1, 1]} : vector<32x192xf32> to vector<8x32xf32>
    %cst_20 = arith.constant dense<0.000000e+00> : vector<16x32xf32>
    %60 = tpu.matmul %58, %59, %cst_20 {dimension_numbers = #tpu.dot_dimension_numbers<[1], [0], [0], [1], [0, 0, 1, 1], [], []>} : vector<16x8xf32>, vector<8x32xf32>, vector<16x32xf32> -> vector<16x32xf32>
    %61 = arith.addf %40, %60 : vector<16x32xf32>
    %62 = vector.extract_strided_slice %39 {offsets = [0, 8], sizes = [16, 8], strides = [1, 1]} : vector<16x96xf32> to vector<16x8xf32>
    %63 = vector.extract_strided_slice %39 {offsets = [0, 40], sizes = [16, 8], strides = [1, 1]} : vector<16x96xf32> to vector<16x8xf32>
    %64 = vector.extract_strided_slice %39 {offsets = [0, 72], sizes = [16, 8], strides = [1, 1]} : vector<16x96xf32> to vector<16x8xf32>
    %cst_21 = arith.constant dense<0.000000e+00> : vector<16x16xf32>
    %65 = tpu.matmul %62, %63, %cst_21 {dimension_numbers = #tpu.dot_dimension_numbers<[1], [1], [0], [0], [0, 0, 1, 0], [], []>} : vector<16x8xf32>, vector<16x8xf32>, vector<16x16xf32> -> vector<16x16xf32>
    %cst_22 = arith.constant 0.353553385 : f32
    %66 = vector.broadcast %cst_22 : f32 to vector<16x16xf32>
    %67 = arith.mulf %65, %66 : vector<16x16xf32>
    %68 = arith.addf %67, %3 : vector<16x16xf32>
    %cst_23 = arith.constant dense<0xFF800000> : vector<16xf32>
    %69 = vector.multi_reduction <maximumf>, %68, %cst_23 [1] : vector<16x16xf32> to vector<16xf32>
    %70 = vector.shape_cast %69 : vector<16xf32> to vector<16x1xf32>
    %71 = vector.broadcast %70 : vector<16x1xf32> to vector<16x16xf32>
    %72 = arith.subf %68, %71 : vector<16x16xf32>
    %73 = math.exp %72 : vector<16x16xf32>
    %cst_24 = arith.constant dense<0.000000e+00> : vector<16xf32>
    %74 = vector.multi_reduction <add>, %73, %cst_24 [1] : vector<16x16xf32> to vector<16xf32>
    %75 = vector.shape_cast %74 : vector<16xf32> to vector<16x1xf32>
    %76 = tpu.reciprocal %75 : vector<16x1xf32> -> vector<16x1xf32>
    %77 = vector.broadcast %76 : vector<16x1xf32> to vector<16x16xf32>
    %78 = arith.mulf %73, %77 : vector<16x16xf32>
    %cst_25 = arith.constant dense<0.000000e+00> : vector<16x8xf32>
    %79 = tpu.matmul %78, %64, %cst_25 {dimension_numbers = #tpu.dot_dimension_numbers<[1], [0], [0], [1], [0, 0, 1, 1], [], []>} : vector<16x16xf32>, vector<16x8xf32>, vector<16x8xf32> -> vector<16x8xf32>
    %80 = vector.extract_strided_slice %4 {offsets = [8, 96], sizes = [8, 32], strides = [1, 1]} : vector<32x192xf32> to vector<8x32xf32>
    %cst_26 = arith.constant dense<0.000000e+00> : vector<16x32xf32>
    %81 = tpu.matmul %79, %80, %cst_26 {dimension_numbers = #tpu.dot_dimension_numbers<[1], [0], [0], [1], [0, 0, 1, 1], [], []>} : vector<16x8xf32>, vector<8x32xf32>, vector<16x32xf32> -> vector<16x32xf32>
    %82 = arith.addf %61, %81 : vector<16x32xf32>
    %83 = vector.extract_strided_slice %39 {offsets = [0, 16], sizes = [16, 8], strides = [1, 1]} : vector<16x96xf32> to vector<16x8xf32>
    %84 = vector.extract_strided_slice %39 {offsets = [0, 48], sizes = [16, 8], strides = [1, 1]} : vector<16x96xf32> to vector<16x8xf32>
    %85 = vector.extract_strided_slice %39 {offsets = [0, 80], sizes = [16, 8], strides = [1, 1]} : vector<16x96xf32> to vector<16x8xf32>
    %cst_27 = arith.constant dense<0.000000e+00> : vector<16x16xf32>
    %86 = tpu.matmul %83, %84, %cst_27 {dimension_numbers = #tpu.dot_dimension_numbers<[1], [1], [0], [0], [0, 0, 1, 0], [], []>} : vector<16x8xf32>, vector<16x8xf32>, vector<16x16xf32> -> vector<16x16xf32>
    %cst_28 = arith.constant 0.353553385 : f32
    %87 = vector.broadcast %cst_28 : f32 to vector<16x16xf32>
    %88 = arith.mulf %86, %87 : vector<16x16xf32>
    %89 = arith.addf %88, %3 : vector<16x16xf32>
    %cst_29 = arith.constant dense<0xFF800000> : vector<16xf32>
    %90 = vector.multi_reduction <maximumf>, %89, %cst_29 [1] : vector<16x16xf32> to vector<16xf32>
    %91 = vector.shape_cast %90 : vector<16xf32> to vector<16x1xf32>
    %92 = vector.broadcast %91 : vector<16x1xf32> to vector<16x16xf32>
    %93 = arith.subf %89, %92 : vector<16x16xf32>
    %94 = math.exp %93 : vector<16x16xf32>
    %cst_30 = arith.constant dense<0.000000e+00> : vector<16xf32>
    %95 = vector.multi_reduction <add>, %94, %cst_30 [1] : vector<16x16xf32> to vector<16xf32>
    %96 = vector.shape_cast %95 : vector<16xf32> to vector<16x1xf32>
    %97 = tpu.reciprocal %96 : vector<16x1xf32> -> vector<16x1xf32>
    %98 = vector.broadcast %97 : vector<16x1xf32> to vector<16x16xf32>
    %99 = arith.mulf %94, %98 : vector<16x16xf32>
    %cst_31 = arith.constant dense<0.000000e+00> : vector<16x8xf32>
    %100 = tpu.matmul %99, %85, %cst_31 {dimension_numbers = #tpu.dot_dimension_numbers<[1], [0], [0], [1], [0, 0, 1, 1], [], []>} : vector<16x16xf32>, vector<16x8xf32>, vector<16x8xf32> -> vector<16x8xf32>
    %101 = vector.extract_strided_slice %4 {offsets = [16, 96], sizes = [8, 32], strides = [1, 1]} : vector<32x192xf32> to vector<8x32xf32>
    %cst_32 = arith.constant dense<0.000000e+00> : vector<16x32xf32>
    %102 = tpu.matmul %100, %101, %cst_32 {dimension_numbers = #tpu.dot_dimension_numbers<[1], [0], [0], [1], [0, 0, 1, 1], [], []>} : vector<16x8xf32>, vector<8x32xf32>, vector<16x32xf32> -> vector<16x32xf32>
    %103 = arith.addf %82, %102 : vector<16x32xf32>
    %104 = vector.extract_strided_slice %39 {offsets = [0, 24], sizes = [16, 8], strides = [1, 1]} : vector<16x96xf32> to vector<16x8xf32>
    %105 = vector.extract_strided_slice %39 {offsets = [0, 56], sizes = [16, 8], strides = [1, 1]} : vector<16x96xf32> to vector<16x8xf32>
    %106 = vector.extract_strided_slice %39 {offsets = [0, 88], sizes = [16, 8], strides = [1, 1]} : vector<16x96xf32> to vector<16x8xf32>
    %cst_33 = arith.constant dense<0.000000e+00> : vector<16x16xf32>
    %107 = tpu.matmul %104, %105, %cst_33 {dimension_numbers = #tpu.dot_dimension_numbers<[1], [1], [0], [0], [0, 0, 1, 0], [], []>} : vector<16x8xf32>, vector<16x8xf32>, vector<16x16xf32> -> vector<16x16xf32>
    %cst_34 = arith.constant 0.353553385 : f32
    %108 = vector.broadcast %cst_34 : f32 to vector<16x16xf32>
    %109 = arith.mulf %107, %108 : vector<16x16xf32>
    %110 = arith.addf %109, %3 : vector<16x16xf32>
    %cst_35 = arith.constant dense<0xFF800000> : vector<16xf32>
    %111 = vector.multi_reduction <maximumf>, %110, %cst_35 [1] : vector<16x16xf32> to vector<16xf32>
    %112 = vector.shape_cast %111 : vector<16xf32> to vector<16x1xf32>
    %113 = vector.broadcast %112 : vector<16x1xf32> to vector<16x16xf32>
    %114 = arith.subf %110, %113 : vector<16x16xf32>
    %115 = math.exp %114 : vector<16x16xf32>
    %cst_36 = arith.constant dense<0.000000e+00> : vector<16xf32>
    %116 = vector.multi_reduction <add>, %115, %cst_36 [1] : vector<16x16xf32> to vector<16xf32>
    %117 = vector.shape_cast %116 : vector<16xf32> to vector<16x1xf32>
    %118 = tpu.reciprocal %117 : vector<16x1xf32> -> vector<16x1xf32>
    %119 = vector.broadcast %118 : vector<16x1xf32> to vector<16x16xf32>
    %120 = arith.mulf %115, %119 : vector<16x16xf32>
    %cst_37 = arith.constant dense<0.000000e+00> : vector<16x8xf32>
    %121 = tpu.matmul %120, %106, %cst_37 {dimension_numbers = #tpu.dot_dimension_numbers<[1], [0], [0], [1], [0, 0, 1, 1], [], []>} : vector<16x16xf32>, vector<16x8xf32>, vector<16x8xf32> -> vector<16x8xf32>
    %122 = vector.extract_strided_slice %4 {offsets = [24, 96], sizes = [8, 32], strides = [1, 1]} : vector<32x192xf32> to vector<8x32xf32>
    %cst_38 = arith.constant dense<0.000000e+00> : vector<16x32xf32>
    %123 = tpu.matmul %121, %122, %cst_38 {dimension_numbers = #tpu.dot_dimension_numbers<[1], [0], [0], [1], [0, 0, 1, 1], [], []>} : vector<16x8xf32>, vector<8x32xf32>, vector<16x32xf32> -> vector<16x32xf32>
    %124 = arith.addf %103, %123 : vector<16x32xf32>
    %125 = arith.addf %1, %124 : vector<16x32xf32>
    %126 = vector.broadcast %7 : vector<1x32xf32> to vector<16x32xf32>
    %127 = arith.addf %125, %126 : vector<16x32xf32>
    %cst_39 = arith.constant dense<0.000000e+00> : vector<16xf32>
    %128 = vector.multi_reduction <add>, %127, %cst_39 [1] : vector<16x32xf32> to vector<16xf32>
    %129 = vector.shape_cast %128 : vector<16xf32> to vector<16x1xf32>
    %cst_40 = arith.constant 3.200000e+01 : f32
    %130 = vector.broadcast %cst_40 : f32 to vector<16x1xf32>
    %131 = arith.divf %129, %130 : vector<16x1xf32>
    %132 = vector.broadcast %131 : vector<16x1xf32> to vector<16x32xf32>
    %133 = arith.subf %127, %132 : vector<16x32xf32>
    %134 = arith.mulf %133, %133 : vector<16x32xf32>
    %cst_41 = arith.constant dense<0.000000e+00> : vector<16xf32>
    %135 = vector.multi_reduction <add>, %134, %cst_41 [1] : vector<16x32xf32> to vector<16xf32>
    %136 = vector.shape_cast %135 : vector<16xf32> to vector<16x1xf32>
    %cst_42 = arith.constant 0.0322580636 : f32
    %137 = vector.broadcast %cst_42 : f32 to vector<16x1xf32>
    %138 = arith.mulf %136, %137 : vector<16x1xf32>
    %139 = vector.broadcast %131 : vector<16x1xf32> to vector<16x32xf32>
    %140 = arith.subf %127, %139 : vector<16x32xf32>
    %cst_43 = arith.constant 9.99999997E-7 : f32
    %141 = vector.broadcast %cst_43 : f32 to vector<16x1xf32>
    %142 = arith.addf %138, %141 : vector<16x1xf32>
    %143 = math.rsqrt %142 : vector<16x1xf32>
    %144 = vector.broadcast %143 : vector<16x1xf32> to vector<16x32xf32>
    %145 = arith.mulf %140, %144 : vector<16x32xf32>
    %146 = vector.broadcast %10 : vector<1x32xf32> to vector<16x32xf32>
    %147 = arith.mulf %146, %145 : vector<16x32xf32>
    %148 = vector.broadcast %11 : vector<1x32xf32> to vector<16x32xf32>
    %149 = arith.addf %147, %148 : vector<16x32xf32>
    %150 = vector.extract_strided_slice %4 {offsets = [0, 128], sizes = [32, 64], strides = [1, 1]} : vector<32x192xf32> to vector<32x64xf32>
    %cst_44 = arith.constant dense<0.000000e+00> : vector<16x64xf32>
    %151 = tpu.matmul %149, %150, %cst_44 {dimension_numbers = #tpu.dot_dimension_numbers<[1], [0], [0], [1], [0, 0, 1, 1], [], []>} : vector<16x32xf32>, vector<32x64xf32>, vector<16x64xf32> -> vector<16x64xf32>
    %152 = vector.broadcast %12 : vector<1x64xf32> to vector<16x64xf32>
    %153 = arith.addf %151, %152 : vector<16x64xf32>
    %cst_45 = arith.constant 0.000000e+00 : f32
    %154 = vector.broadcast %cst_45 : f32 to vector<16x64xf32>
    %155 = arith.maximumf %153, %154 : vector<16x64xf32>
    %c0_46 = arith.constant 0 : index
    %c0_47 = arith.constant 0 : index
    %156 = vector.load %arg4[%c0_46, %c0_47] : memref<64x32xf32, #tpu.memory_space<vmem>>, vector<64x32xf32>
    %cst_48 = arith.constant dense<0.000000e+00> : vector<16x32xf32>
    %157 = tpu.matmul %155, %156, %cst_48 {dimension_numbers = #tpu.dot_dimension_numbers<[1], [0], [0], [1], [0, 0, 1, 1], [], []>} : vector<16x64xf32>, vector<64x32xf32>, vector<16x32xf32> -> vector<16x32xf32>
    %158 = vector.broadcast %13 : vector<1x32xf32> to vector<16x32xf32>
    %159 = arith.addf %157, %158 : vector<16x32xf32>
    %160 = arith.addf %127, %159 : vector<16x32xf32>
    %c0_49 = arith.constant 0 : index
    %c0_50 = arith.constant 0 : index
    %c0_51 = arith.constant 0 : index
    %161 = vector.load %arg6[%c0_49, %c0_50, %c0_51] : memref<1x16x32xf32, #tpu.memory_space<vmem>>, vector<1x16x32xf32>
    %162 = vector.shape_cast %161 : vector<1x16x32xf32> to vector<16x32xf32>
    %163 = vector.shape_cast %160 : vector<16x32xf32> to vector<1x16x32xf32>
    tpu.vector_store %arg6[%c0_49, %c0_50, %c0_51], %163 {strides = array<i32>} : memref<1x16x32xf32, #tpu.memory_space<vmem>>, vector<1x16x32xf32>,
    return
  }
  func.func @transform_0(%arg0: i32) -> (i32, i32, i32) {
    %c0_i32 = arith.constant 0 : i32
    %c0_i32_0 = arith.constant 0 : i32
    %c0_i32_1 = arith.constant 0 : i32
    return %arg0, %c0_i32, %c0_i32_0 : i32, i32, i32
  }
  func.func @transform_1(%arg0: i32) -> (i32, i32, i32) {
    %c0_i32 = arith.constant 0 : i32
    %c0_i32_0 = arith.constant 0 : i32
    %c0_i32_1 = arith.constant 0 : i32
    return %arg0, %c0_i32, %c0_i32_0 : i32, i32, i32
  }
  func.func @transform_2(%arg0: i32) -> (i32, i32) {
    %c0_i32 = arith.constant 0 : i32
    %c0_i32_0 = arith.constant 0 : i32
    %c0_i32_1 = arith.constant 0 : i32
    return %c0_i32, %c0_i32_0 : i32, i32
  }
  func.func @transform_3(%arg0: i32) -> (i32, i32) {
    %c0_i32 = arith.constant 0 : i32
    %c0_i32_0 = arith.constant 0 : i32
    %c0_i32_1 = arith.constant 0 : i32
    return %c0_i32, %c0_i32_0 : i32, i32
  }
  func.func @transform_4(%arg0: i32) -> (i32, i32) {
    %c0_i32 = arith.constant 0 : i32
    %c0_i32_0 = arith.constant 0 : i32
    %c0_i32_1 = arith.constant 0 : i32
    return %c0_i32, %c0_i32_0 : i32, i32
  }
  func.func @transform_5(%arg0: i32) -> (i32, i32, i32) {
    %c0_i32 = arith.constant 0 : i32
    %c0_i32_0 = arith.constant 0 : i32
    %c0_i32_1 = arith.constant 0 : i32
    return %arg0, %c0_i32, %c0_i32_0 : i32, i32, i32
  }
}

</mosaic_0001>

<llo_original>
// kernel: tpu_custom_call.1
$region0: #{tpu_custom_call.1}
  #allocation0 [shape = 'u32[]', space=smem, size = 0x4, offset = 0x4, fixed_abs, tag = 'smem constant byte address 0x4 - core index']
  #allocation1 [shape = 'u32[144,128]{1,0:T(1,128)}', space=vmem, size = 0x12000, scoped, tag = 'internal scratch']
  %s0 = inlined_call_operand.vmem [shape: f32[1,16,32], index: 0, kind: input, shape index: {}]
  %s1 = inlined_call_operand.vmem [shape: f32[1,16,16], index: 1, kind: input, shape index: {}]
  %s2 = inlined_call_operand.vmem [shape: f32[32,192], index: 2, kind: input, shape index: {}]
  %s3 = inlined_call_operand.vmem [shape: f32[64,32], index: 3, kind: input, shape index: {}]
  %s4 = inlined_call_operand.vmem [shape: f32[8,96], index: 4, kind: input, shape index: {}]
  %s5 = inlined_call_operand.hbm [shape: f32[1,16,32], index: 5, kind: output, shape index: {}]
  %s6 = sld [smem:[#allocation0]]
  $region30: #{tpu_custom_call.1} parent=0
    _
  %s8 = ssub.s32 1, %s6
  %s9 = scalar_select 0, %s8, %s6
  $region1: #{tpu_custom_call.1} parent=0
    #allocation2 [shape = 'u8[8192]{0}', space=vmem, size = 0x2000, scoped, tag = 'output window, operand 0, single buffered']
    #allocation3 [shape = 's32[1]{0}', space=sflag, size = 0x4, scoped, tag = 'scoped memory for tpu_custom_call.1']
    %10 = vsyncpa [#allocation3], 0
    // Predicated region
    $region2: #{tpu_custom_call.1} parent=1 // pred_check
      _
    $region3: #{tpu_custom_call.1} parent=1 // pred_check_branch
      %12 = sbr.rel (0) target = $region5
    $region4: #{tpu_custom_call.1} parent=1 // pred_region
      _
    $region5: #{tpu_custom_call.1} parent=1 // pred_fallthru
      _
    // Predicated region
    $region6: #{tpu_custom_call.1} parent=1 // pred_check
      _
    $region7: #{tpu_custom_call.1} parent=1 // pred_check_branch
      %14 = sbr.rel (0) target = $region9
    $region8: #{tpu_custom_call.1} parent=1 // pred_region
      _
    $region9: #{tpu_custom_call.1} parent=1 // pred_fallthru
      _
    // Predicated region
    $region10: #{tpu_custom_call.1} parent=1 // pred_check
      _
    $region11: #{tpu_custom_call.1} parent=1 // pred_check_branch
      %16 = sbr.rel (0) target = $region13
    $region12: #{tpu_custom_call.1} parent=1 // pred_region
      _
    $region13: #{tpu_custom_call.1} parent=1 // pred_fallthru
      _
    // Predicated region
    $region14: #{tpu_custom_call.1} parent=1 // pred_check
      _
    $region15: #{tpu_custom_call.1} parent=1 // pred_check_branch
      %18 = sbr.rel (0) target = $region17
    $region16: #{tpu_custom_call.1} parent=1 // pred_region
      _
    $region17: #{tpu_custom_call.1} parent=1 // pred_fallthru
      _
    // Predicated region
    $region18: #{tpu_custom_call.1} parent=1 // pred_check
      _
    $region19: #{tpu_custom_call.1} parent=1 // pred_check_branch
      %20 = sbr.rel (0) target = $region21
    $region20: #{tpu_custom_call.1} parent=1 // pred_region
      _
    $region21: #{tpu_custom_call.1} parent=1 // pred_fallthru
      _
    %v21 = vld [vmem:[%s0] sm:$0xff]
    %v22 = vld [vmem:[%s0 + $0x8] sm:$0xff]
    %v23 = vld [vmem:[%s1] sm:$0xff]
    %v24 = vld [vmem:[%s1 + $0x8] sm:$0xff]
    %v25 = vld [vmem:[%s2] sm:$0xff]
    %v26 = vld [vmem:[%s2 + $0x8] sm:$0xff]
    %v27 = vld [vmem:[%s2 + $0x10] sm:$0xff]
    %v28 = vld [vmem:[%s2 + $0x18] sm:$0xff]
    %v29 = vld [vmem:[%s2 + $0x20] sm:$0xff]
    %v30 = vld [vmem:[%s2 + $0x28] sm:$0xff]
    %v31 = vld [vmem:[%s2 + $0x30] sm:$0xff]
    %v32 = vld [vmem:[%s2 + $0x38] sm:$0xff]
    %v33 = vld [vmem:[%s4] sm:$0xff]
    %vm34 = vcmask 261120
    %v35 = vsel %vm34, %v21, 0.0
    %36 = vadd.xlane.f32.xlu0 %v35
    %v37 = vpop.xlane.xlu0 %36
    %v38 = vsel %vm34, %v22, 0.0
    %39 = vadd.xlane.f32.xlu0 %v38
    %v40 = vpop.xlane.xlu0 %39
    %v41 = vrcp.pop 32.0
    %v42 = vmul.f32 %v37, %v41
    %v43 = vmul.f32 %v40, %v41
    %v44 = vsub.f32 %v21, %v42
    %v45 = vsub.f32 %v22, %v43
    %v46 = vmul.f32 %v44, %v44
    %v47 = vmul.f32 %v45, %v45
    %v48 = vsel %vm34, %v46, 0.0
    %49 = vadd.xlane.f32.xlu0 %v48
    %v50 = vpop.xlane.xlu0 %49
    %v51 = vsel %vm34, %v47, 0.0
    %52 = vadd.xlane.f32.xlu0 %v51
    %v53 = vpop.xlane.xlu0 %52
    %v54 = vmul.f32 %v50, 0.032258064
    %v55 = vmul.f32 %v53, 0.032258064
    %v56 = vadd.f32 %v54, 1e-06
    %v57 = vadd.f32 %v55, 1e-06
    %v58 = vrsqrt.pop %v56
    %v59 = vrsqrt.pop %v57
    %v60 = vmul.f32 %v44, %v58
    %v61 = vmul.f32 %v45, %v59
    %v62 = vlaneseq
    %v63 = vshrl.u32 %v62, 7
    %v64 = vsub.s32 2, %v63
    %v65 = vrot.slane %v33, %v64
    %v66 = vmul.f32 %v65, %v60
    %v67 = vmul.f32 %v65, %v61
    %v68 = vlaneseq
    %v69 = vshrl.u32 %v68, 7
    %v70 = vsub.s32 3, %v69
    %v71 = vrot.slane %v33, %v70
    %v72 = vadd.f32 %v66, %v71
    %v73 = vadd.f32 %v67, %v71
    %v74 = vlaneseq
    %v75 = vshrl.u32 %v74, 7
    %v76 = vsub.s32 0, %v75
    %v77 = vrot.slane %v33, %v76
    %v79 = vsel %vm34, %v72, 0
    %v82 = vsel %vm34, %v73, 0
    %84 = vmatprep.subr.mxu0 0.0
    %85 = vmatpush1.msra.mxu0 %v25
    %86 = vmatprep.subr.mxu0 0.0
    %87 = vmatpush1.msra.mxu0 %v27
    %88 = vmatprep.subr.mxu0 0.0
    %89 = vmatpush1.msra.mxu0 %v29
    %90 = vmatprep.subr.mxu0 0.0
    %91 = vmatpush1.msra.mxu0 %v31
    %92 = vmatprep.subr.mxu0 0.0
    %93 = vmatpush1.msra.mxu0 0.0
    %94 = vmatprep.subr.mxu0 0.0
    %95 = vmatpush1.msra.mxu0 0.0
    %96 = vmatprep.subr.mxu0 0.0
    %97 = vmatpush1.msra.mxu0 0.0
    %98 = vmatprep.subr.mxu0 0.0
    %99 = vmatpush1.msra.mxu0 0.0
    %100 = vmatprep.subr.mxu0 0.0
    %101 = vmatpush1.msra.mxu0 0.0
    %102 = vmatprep.subr.mxu0 0.0
    %103 = vmatpush1.msra.mxu0 0.0
    %104 = vmatprep.subr.mxu0 0.0
    %105 = vmatpush1.msra.mxu0 0.0
    %106 = vmatprep.subr.mxu0 0.0
    %107 = vmatpush1.msra.mxu0 0.0
    %108 = vmatprep.subr.mxu0 0.0
    %109 = vmatpush1.msra.mxu0 0.0
    %110 = vmatprep.subr.mxu0 0.0
    %111 = vmatpush1.msra.mxu0 0.0
    %112 = vmatprep.subr.mxu0 0.0
    %113 = vmatpush1.msra.mxu0 0.0
    %114 = vmatprep.subr.mxu0 0.0
    %115 = vmatpush1.msra.mxu0 0.0
    %116 = vmatprep.subr.mxu0 0.0
    %117 = vmatpush1.msra.mxu0 0.0
    %118 = vmatprep.subr.mxu0 0.0
    %119 = vmatpush1.msra.mxu0 0.0
    %120 = vmatprep.subr.mxu0 0.0
    %121 = vmatpush1.msra.mxu0 0.0
    %122 = vmatprep.subr.mxu0 0.0
    %123 = vmatpush1.msra.mxu0 0.0
    %124 = vmatprep.subr.mxu0 0.0
    %125 = vmatpush1.msra.mxu0 0.0
    %126 = vmatprep.subr.mxu0 0.0
    %127 = vmatpush1.msra.mxu0 0.0
    %128 = vmatprep.subr.mxu0 0.0
    %129 = vmatpush1.msra.mxu0 0.0
    %130 = vmatprep.subr.mxu0 0.0
    %131 = vmatpush1.msra.mxu0 0.0
    %132 = vmatprep.subr.mxu0 0.0
    %133 = vmatpush1.msra.mxu0 0.0
    %134 = vmatprep.subr.mxu0 0.0
    %135 = vmatpush1.msra.mxu0 0.0
    %136 = vmatprep.subr.mxu0 0.0
    %137 = vmatpush1.msra.mxu0 0.0
    %138 = vmatprep.subr.mxu0 0.0
    %139 = vmatpush1.msra.mxu0 0.0
    %140 = vmatprep.subr.mxu0 0.0
    %141 = vmatpush1.msra.mxu0 0.0
    %142 = vmatprep.subr.mxu0 0.0
    %143 = vmatpush1.msra.mxu0 0.0
    %144 = vmatprep.subr.mxu0 0.0
    %145 = vmatpush1.msra.mxu0 0.0
    %146 = vmatprep.subr.mxu0 0.0
    %147 = vmatpush1.msra.mxu0 0.0
    %148 = vmatprep.mubr.f32.mxu0 0.0
    %149 = vmatmul.mubr.f32.gmra.mrb[0].mxu0 %v79
    %v150 = vpop.f32.mrb[0].mxu0
    %v151 = vadd.f32 %v77, %v150
    %v152 = vpop.f32.mrb[0].mxu0
    %153 = vmatprep.mubr.f32.mxu0 0.0
    %154 = vmatmul.mubr.f32.gmra.mrb[0].mxu0 %v82
    %v155 = vpop.f32.mrb[0].mxu0
    %v156 = vadd.f32 %v77, %v155
    %v157 = vpop.f32.mrb[0].mxu0
    %158 = vdwg.mxu0
    %161 = vrot.lane.b32.xlu0 %v151, 96
    %v162 = vpop.permute.xlu0 %161
    %163 = vrot.lane.b32.xlu0 %v156, 96
    %v164 = vpop.permute.xlu0 %163
    %vm165 = vcmask 64512
    %v166 = vsel %vm165, %v151, 0
    %v168 = vsel %vm165, %v156, 0
    %v170 = vsel %vm165, %v162, 0
    %v172 = vsel %vm165, %v164, 0
    %174 = vmatprep.subr.mxu0 0.0
    %175 = vmatpush1.xpose.msra.mxu0 %v170
    %176 = vmatprep.subr.mxu0 0.0
    %177 = vmatpush1.xpose.msra.mxu0 %v172
    %178 = vmatprep.subr.mxu0 0.0
    %179 = vmatpush1.xpose.msra.mxu0 0.0
    %180 = vmatprep.subr.mxu0 0.0
    %181 = vmatpush1.xpose.msra.mxu0 0.0
    %182 = vmatprep.subr.mxu0 0.0
    %183 = vmatpush1.xpose.msra.mxu0 0.0
    %184 = vmatprep.subr.mxu0 0.0
    %185 = vmatpush1.xpose.msra.mxu0 0.0
    %186 = vmatprep.subr.mxu0 0.0
    %187 = vmatpush1.xpose.msra.mxu0 0.0
    %188 = vmatprep.subr.mxu0 0.0
    %189 = vmatpush1.xpose.msra.mxu0 0.0
    %190 = vmatprep.subr.mxu0 0.0
    %191 = vmatpush1.xpose.msra.mxu0 0.0
    %192 = vmatprep.subr.mxu0 0.0
    %193 = vmatpush1.xpose.msra.mxu0 0.0
    %194 = vmatprep.subr.mxu0 0.0
    %195 = vmatpush1.xpose.msra.mxu0 0.0
    %196 = vmatprep.subr.mxu0 0.0
    %197 = vmatpush1.xpose.msra.mxu0 0.0
    %198 = vmatprep.subr.mxu0 0.0
    %199 = vmatpush1.xpose.msra.mxu0 0.0
    %200 = vmatprep.subr.mxu0 0.0
    %201 = vmatpush1.xpose.msra.mxu0 0.0
    %202 = vmatprep.subr.mxu0 0.0
    %203 = vmatpush1.xpose.msra.mxu0 0.0
    %204 = vmatprep.subr.mxu0 0.0
    %205 = vmatpush1.xpose.msra.mxu0 0.0
    %206 = vmatprep.subr.mxu0 0.0
    %207 = vmatpush1.xpose.msra.mxu0 0.0
    %208 = vmatprep.subr.mxu0 0.0
    %209 = vmatpush1.xpose.msra.mxu0 0.0
    %210 = vmatprep.subr.mxu0 0.0
    %211 = vmatpush1.xpose.msra.mxu0 0.0
    %212 = vmatprep.subr.mxu0 0.0
    %213 = vmatpush1.xpose.msra.mxu0 0.0
    %214 = vmatprep.subr.mxu0 0.0
    %215 = vmatpush1.xpose.msra.mxu0 0.0
    %216 = vmatprep.subr.mxu0 0.0
    %217 = vmatpush1.xpose.msra.mxu0 0.0
    %218 = vmatprep.subr.mxu0 0.0
    %219 = vmatpush1.xpose.msra.mxu0 0.0
    %220 = vmatprep.subr.mxu0 0.0
    %221 = vmatpush1.xpose.msra.mxu0 0.0
    %222 = vmatprep.subr.mxu0 0.0
    %223 = vmatpush1.xpose.msra.mxu0 0.0
    %224 = vmatprep.subr.mxu0 0.0
    %225 = vmatpush1.xpose.msra.mxu0 0.0
    %226 = vmatprep.subr.mxu0 0.0
    %227 = vmatpush1.xpose.msra.mxu0 0.0
    %228 = vmatprep.subr.mxu0 0.0
    %229 = vmatpush1.xpose.msra.mxu0 0.0
    %230 = vmatprep.subr.mxu0 0.0
    %231 = vmatpush1.xpose.msra.mxu0 0.0
    %232 = vmatprep.subr.mxu0 0.0
    %233 = vmatpush1.xpose.msra.mxu0 0.0
    %234 = vmatprep.subr.mxu0 0.0
    %235 = vmatpush1.xpose.msra.mxu0 0.0
    %236 = vmatprep.subr.mxu0 0.0
    %237 = vmatpush1.xpose.msra.mxu0 0.0
    %238 = vmatprep.mubr.f32.mxu0 0.0
    %239 = vmatmul.mubr.f32.gmra.mrb[0].mxu0 %v166
    %v240 = vpop.f32.mrb[0].mxu0
    %v241 = vadd.f32 0.0, %v240
    %v242 = vpop.f32.mrb[0].mxu0
    %243 = vmatprep.mubr.f32.mxu0 0.0
    %244 = vmatmul.mubr.f32.gmra.mrb[0].mxu0 %v168
    %v245 = vpop.f32.mrb[0].mxu0
    %v246 = vadd.f32 0.0, %v245
    %v247 = vpop.f32.mrb[0].mxu0
    %248 = vdwg.mxu0
    %v249 = vmul.f32 %v241, 0.35355338
    %v250 = vmul.f32 %v246, 0.35355338
    %v251 = vadd.f32 %v249, %v23
    %v252 = vadd.f32 %v250, %v24
    %vm253 = vcmask 130048
    %v254 = vsel %vm253, %v251, -inf
    %255 = vmax.xlane.f32.xlu0 %v254
    %v256 = vpop.xlane.xlu0 %255
    %v257 = vsel %vm253, %v252, -inf
    %258 = vmax.xlane.f32.xlu0 %v257
    %v259 = vpop.xlane.xlu0 %258
    %v260 = vsub.f32 %v251, %v256
    %v261 = vsub.f32 %v252, %v259
    %v262 = vmul.f32 %v260, 1.442695
    %v263 = vpow.pop %v262
    %v264 = vmul.f32 %v261, 1.442695
    %v265 = vpow.pop %v264
    %v266 = vsel %vm253, %v263, 0.0
    %267 = vadd.xlane.f32.xlu0 %v266
    %v268 = vpop.xlane.xlu0 %267
    %v269 = vsel %vm253, %v265, 0.0
    %270 = vadd.xlane.f32.xlu0 %v269
    %v271 = vpop.xlane.xlu0 %270
    %v272 = vrcp.pop %v268
    %v273 = vrcp.pop %v271
    %v274 = vmul.f32 %v263, %v272
    %v275 = vmul.f32 %v265, %v273
    %276 = vrot.lane.b32.xlu0 %v151, 64
    %v277 = vpop.permute.xlu0 %276
    %278 = vrot.lane.b32.xlu0 %v156, 64
    %v279 = vpop.permute.xlu0 %278
    %v283 = vsel %vm253, %v274, 0
    %v286 = vsel %vm253, %v275, 0
    %288 = vmatprep.subr.mxu0 0.0
    %289 = vmatpush1.msra.mxu0 %v277
    %290 = vmatprep.subr.mxu0 0.0
    %291 = vmatpush1.msra.mxu0 %v279
    %292 = vmatprep.subr.mxu0 0.0
    %293 = vmatpush1.msra.mxu0 0.0
    %294 = vmatprep.subr.mxu0 0.0
    %295 = vmatpush1.msra.mxu0 0.0
    %296 = vmatprep.subr.mxu0 0.0
    %297 = vmatpush1.msra.mxu0 0.0
    %298 = vmatprep.subr.mxu0 0.0
    %299 = vmatpush1.msra.mxu0 0.0
    %300 = vmatprep.subr.mxu0 0.0
    %301 = vmatpush1.msra.mxu0 0.0
    %302 = vmatprep.subr.mxu0 0.0
    %303 = vmatpush1.msra.mxu0 0.0
    %304 = vmatprep.subr.mxu0 0.0
    %305 = vmatpush1.msra.mxu0 0.0
    %306 = vmatprep.subr.mxu0 0.0
    %307 = vmatpush1.msra.mxu0 0.0
    %308 = vmatprep.subr.mxu0 0.0
    %309 = vmatpush1.msra.mxu0 0.0
    %310 = vmatprep.subr.mxu0 0.0
    %311 = vmatpush1.msra.mxu0 0.0
    %312 = vmatprep.subr.mxu0 0.0
    %313 = vmatpush1.msra.mxu0 0.0
    %314 = vmatprep.subr.mxu0 0.0
    %315 = vmatpush1.msra.mxu0 0.0
    %316 = vmatprep.subr.mxu0 0.0
    %317 = vmatpush1.msra.mxu0 0.0
    %318 = vmatprep.subr.mxu0 0.0
    %319 = vmatpush1.msra.mxu0 0.0
    %320 = vmatprep.subr.mxu0 0.0
    %321 = vmatpush1.msra.mxu0 0.0
    %322 = vmatprep.subr.mxu0 0.0
    %323 = vmatpush1.msra.mxu0 0.0
    %324 = vmatprep.subr.mxu0 0.0
    %325 = vmatpush1.msra.mxu0 0.0
    %326 = vmatprep.subr.mxu0 0.0
    %327 = vmatpush1.msra.mxu0 0.0
    %328 = vmatprep.subr.mxu0 0.0
    %329 = vmatpush1.msra.mxu0 0.0
    %330 = vmatprep.subr.mxu0 0.0
    %331 = vmatpush1.msra.mxu0 0.0
    %332 = vmatprep.subr.mxu0 0.0
    %333 = vmatpush1.msra.mxu0 0.0
    %334 = vmatprep.subr.mxu0 0.0
    %335 = vmatpush1.msra.mxu0 0.0
    %336 = vmatprep.subr.mxu0 0.0
    %337 = vmatpush1.msra.mxu0 0.0
    %338 = vmatprep.subr.mxu0 0.0
    %339 = vmatpush1.msra.mxu0 0.0
    %340 = vmatprep.subr.mxu0 0.0
    %341 = vmatpush1.msra.mxu0 0.0
    %342 = vmatprep.subr.mxu0 0.0
    %343 = vmatpush1.msra.mxu0 0.0
    %344 = vmatprep.subr.mxu0 0.0
    %345 = vmatpush1.msra.mxu0 0.0
    %346 = vmatprep.subr.mxu0 0.0
    %347 = vmatpush1.msra.mxu0 0.0
    %348 = vmatprep.subr.mxu0 0.0
    %349 = vmatpush1.msra.mxu0 0.0
    %350 = vmatprep.subr.mxu0 0.0
    %351 = vmatpush1.msra.mxu0 0.0
    %352 = vmatprep.mubr.f32.mxu0 0.0
    %353 = vmatmul.mubr.f32.gmra.mrb[0].mxu0 %v283
    %v354 = vpop.f32.mrb[0].mxu0
    %v355 = vadd.f32 0.0, %v354
    %v356 = vpop.f32.mrb[0].mxu0
    %357 = vmatprep.mubr.f32.mxu0 0.0
    %358 = vmatmul.mubr.f32.gmra.mrb[0].mxu0 %v286
    %v359 = vpop.f32.mrb[0].mxu0
    %v360 = vadd.f32 0.0, %v359
    %v361 = vpop.f32.mrb[0].mxu0
    %362 = vdwg.mxu0
    %363 = vrot.lane.b32.xlu0 %v151, 120
    %v364 = vpop.permute.xlu0 %363
    %365 = vrot.lane.b32.xlu0 %v156, 120
    %v366 = vpop.permute.xlu0 %365
    %367 = vrot.lane.b32.xlu0 %v151, 88
    %v368 = vpop.permute.xlu0 %367
    %369 = vrot.lane.b32.xlu0 %v156, 88
    %v370 = vpop.permute.xlu0 %369
    %v371 = vsel %vm165, %v364, 0
    %v373 = vsel %vm165, %v366, 0
    %v375 = vsel %vm165, %v368, 0
    %v377 = vsel %vm165, %v370, 0
    %379 = vmatprep.subr.mxu0 0.0
    %380 = vmatpush1.xpose.msra.mxu0 %v375
    %381 = vmatprep.subr.mxu0 0.0
    %382 = vmatpush1.xpose.msra.mxu0 %v377
    %383 = vmatprep.subr.mxu0 0.0
    %384 = vmatpush1.xpose.msra.mxu0 0.0
    %385 = vmatprep.subr.mxu0 0.0
    %386 = vmatpush1.xpose.msra.mxu0 0.0
    %387 = vmatprep.subr.mxu0 0.0
    %388 = vmatpush1.xpose.msra.mxu0 0.0
    %389 = vmatprep.subr.mxu0 0.0
    %390 = vmatpush1.xpose.msra.mxu0 0.0
    %391 = vmatprep.subr.mxu0 0.0
    %392 = vmatpush1.xpose.msra.mxu0 0.0
    %393 = vmatprep.subr.mxu0 0.0
    %394 = vmatpush1.xpose.msra.mxu0 0.0
    %395 = vmatprep.subr.mxu0 0.0
    %396 = vmatpush1.xpose.msra.mxu0 0.0
    %397 = vmatprep.subr.mxu0 0.0
    %398 = vmatpush1.xpose.msra.mxu0 0.0
    %399 = vmatprep.subr.mxu0 0.0
    %400 = vmatpush1.xpose.msra.mxu0 0.0
    %401 = vmatprep.subr.mxu0 0.0
    %402 = vmatpush1.xpose.msra.mxu0 0.0
    %403 = vmatprep.subr.mxu0 0.0
    %404 = vmatpush1.xpose.msra.mxu0 0.0
    %405 = vmatprep.subr.mxu0 0.0
    %406 = vmatpush1.xpose.msra.mxu0 0.0
    %407 = vmatprep.subr.mxu0 0.0
    %408 = vmatpush1.xpose.msra.mxu0 0.0
    %409 = vmatprep.subr.mxu0 0.0
    %410 = vmatpush1.xpose.msra.mxu0 0.0
    %411 = vmatprep.subr.mxu0 0.0
    %412 = vmatpush1.xpose.msra.mxu0 0.0
    %413 = vmatprep.subr.mxu0 0.0
    %414 = vmatpush1.xpose.msra.mxu0 0.0
    %415 = vmatprep.subr.mxu0 0.0
    %416 = vmatpush1.xpose.msra.mxu0 0.0
    %417 = vmatprep.subr.mxu0 0.0
    %418 = vmatpush1.xpose.msra.mxu0 0.0
    %419 = vmatprep.subr.mxu0 0.0
    %420 = vmatpush1.xpose.msra.mxu0 0.0
    %421 = vmatprep.subr.mxu0 0.0
    %422 = vmatpush1.xpose.msra.mxu0 0.0
    %423 = vmatprep.subr.mxu0 0.0
    %424 = vmatpush1.xpose.msra.mxu0 0.0
    %425 = vmatprep.subr.mxu0 0.0
    %426 = vmatpush1.xpose.msra.mxu0 0.0
    %427 = vmatprep.subr.mxu0 0.0
    %428 = vmatpush1.xpose.msra.mxu0 0.0
    %429 = vmatprep.subr.mxu0 0.0
    %430 = vmatpush1.xpose.msra.mxu0 0.0
    %431 = vmatprep.subr.mxu0 0.0
    %432 = vmatpush1.xpose.msra.mxu0 0.0
    %433 = vmatprep.subr.mxu0 0.0
    %434 = vmatpush1.xpose.msra.mxu0 0.0
    %435 = vmatprep.subr.mxu0 0.0
    %436 = vmatpush1.xpose.msra.mxu0 0.0
    %437 = vmatprep.subr.mxu0 0.0
    %438 = vmatpush1.xpose.msra.mxu0 0.0
    %439 = vmatprep.subr.mxu0 0.0
    %440 = vmatpush1.xpose.msra.mxu0 0.0
    %441 = vmatprep.subr.mxu0 0.0
    %442 = vmatpush1.xpose.msra.mxu0 0.0
    %443 = vmatprep.mubr.f32.mxu0 0.0
    %444 = vmatmul.mubr.f32.gmra.mrb[0].mxu0 %v371
    %v445 = vpop.f32.mrb[0].mxu0
    %v446 = vadd.f32 0.0, %v445
    %v447 = vpop.f32.mrb[0].mxu0
    %448 = vmatprep.mubr.f32.mxu0 0.0
    %449 = vmatmul.mubr.f32.gmra.mrb[0].mxu0 %v373
    %v450 = vpop.f32.mrb[0].mxu0
    %v451 = vadd.f32 0.0, %v450
    %v452 = vpop.f32.mrb[0].mxu0
    %453 = vdwg.mxu0
    %v454 = vmul.f32 %v446, 0.35355338
    %v455 = vmul.f32 %v451, 0.35355338
    %v456 = vadd.f32 %v454, %v23
    %v457 = vadd.f32 %v455, %v24
    %v458 = vsel %vm253, %v456, -inf
    %459 = vmax.xlane.f32.xlu0 %v458
    %v460 = vpop.xlane.xlu0 %459
    %v461 = vsel %vm253, %v457, -inf
    %462 = vmax.xlane.f32.xlu0 %v461
    %v463 = vpop.xlane.xlu0 %462
    %v464 = vsub.f32 %v456, %v460
    %v465 = vsub.f32 %v457, %v463
    %v466 = vmul.f32 %v464, 1.442695
    %v467 = vpow.pop %v466
    %v468 = vmul.f32 %v465, 1.442695
    %v469 = vpow.pop %v468
    %v470 = vsel %vm253, %v467, 0.0
    %471 = vadd.xlane.f32.xlu0 %v470
    %v472 = vpop.xlane.xlu0 %471
    %v473 = vsel %vm253, %v469, 0.0
    %474 = vadd.xlane.f32.xlu0 %v473
    %v475 = vpop.xlane.xlu0 %474
    %v476 = vrcp.pop %v472
    %v477 = vrcp.pop %v475
    %v478 = vmul.f32 %v467, %v476
    %v479 = vmul.f32 %v469, %v477
    %480 = vrot.lane.b32.xlu0 %v151, 56
    %v481 = vpop.permute.xlu0 %480
    %482 = vrot.lane.b32.xlu0 %v156, 56
    %v483 = vpop.permute.xlu0 %482
    %v487 = vsel %vm253, %v478, 0
    %v490 = vsel %vm253, %v479, 0
    %492 = vmatprep.subr.mxu0 0.0
    %493 = vmatpush1.msra.mxu0 %v481
    %494 = vmatprep.subr.mxu0 0.0
    %495 = vmatpush1.msra.mxu0 %v483
    %496 = vmatprep.subr.mxu0 0.0
    %497 = vmatpush1.msra.mxu0 0.0
    %498 = vmatprep.subr.mxu0 0.0
    %499 = vmatpush1.msra.mxu0 0.0
    %500 = vmatprep.subr.mxu0 0.0
    %501 = vmatpush1.msra.mxu0 0.0
    %502 = vmatprep.subr.mxu0 0.0
    %503 = vmatpush1.msra.mxu0 0.0
    %504 = vmatprep.subr.mxu0 0.0
    %505 = vmatpush1.msra.mxu0 0.0
    %506 = vmatprep.subr.mxu0 0.0
    %507 = vmatpush1.msra.mxu0 0.0
    %508 = vmatprep.subr.mxu0 0.0
    %509 = vmatpush1.msra.mxu0 0.0
    %510 = vmatprep.subr.mxu0 0.0
    %511 = vmatpush1.msra.mxu0 0.0
    %512 = vmatprep.subr.mxu0 0.0
    %513 = vmatpush1.msra.mxu0 0.0
    %514 = vmatprep.subr.mxu0 0.0
    %515 = vmatpush1.msra.mxu0 0.0
    %516 = vmatprep.subr.mxu0 0.0
    %517 = vmatpush1.msra.mxu0 0.0
    %518 = vmatprep.subr.mxu0 0.0
    %519 = vmatpush1.msra.mxu0 0.0
    %520 = vmatprep.subr.mxu0 0.0
    %521 = vmatpush1.msra.mxu0 0.0
    %522 = vmatprep.subr.mxu0 0.0
    %523 = vmatpush1.msra.mxu0 0.0
    %524 = vmatprep.subr.mxu0 0.0
    %525 = vmatpush1.msra.mxu0 0.0
    %526 = vmatprep.subr.mxu0 0.0
    %527 = vmatpush1.msra.mxu0 0.0
    %528 = vmatprep.subr.mxu0 0.0
    %529 = vmatpush1.msra.mxu0 0.0
    %530 = vmatprep.subr.mxu0 0.0
    %531 = vmatpush1.msra.mxu0 0.0
    %532 = vmatprep.subr.mxu0 0.0
    %533 = vmatpush1.msra.mxu0 0.0
    %534 = vmatprep.subr.mxu0 0.0
    %535 = vmatpush1.msra.mxu0 0.0
    %536 = vmatprep.subr.mxu0 0.0
    %537 = vmatpush1.msra.mxu0 0.0
    %538 = vmatprep.subr.mxu0 0.0
    %539 = vmatpush1.msra.mxu0 0.0
    %540 = vmatprep.subr.mxu0 0.0
    %541 = vmatpush1.msra.mxu0 0.0
    %542 = vmatprep.subr.mxu0 0.0
    %543 = vmatpush1.msra.mxu0 0.0
    %544 = vmatprep.subr.mxu0 0.0
    %545 = vmatpush1.msra.mxu0 0.0
    %546 = vmatprep.subr.mxu0 0.0
    %547 = vmatpush1.msra.mxu0 0.0
    %548 = vmatprep.subr.mxu0 0.0
    %549 = vmatpush1.msra.mxu0 0.0
    %550 = vmatprep.subr.mxu0 0.0
    %551 = vmatpush1.msra.mxu0 0.0
    %552 = vmatprep.subr.mxu0 0.0
    %553 = vmatpush1.msra.mxu0 0.0
    %554 = vmatprep.subr.mxu0 0.0
    %555 = vmatpush1.msra.mxu0 0.0
    %556 = vmatprep.mubr.f32.mxu0 0.0
    %557 = vmatmul.mubr.f32.gmra.mrb[0].mxu0 %v487
    %v558 = vpop.f32.mrb[0].mxu0
    %v559 = vadd.f32 0.0, %v558
    %v560 = vpop.f32.mrb[0].mxu0
    %561 = vmatprep.mubr.f32.mxu0 0.0
    %562 = vmatmul.mubr.f32.gmra.mrb[0].mxu0 %v490
    %v563 = vpop.f32.mrb[0].mxu0
    %v564 = vadd.f32 0.0, %v563
    %v565 = vpop.f32.mrb[0].mxu0
    %566 = vdwg.mxu0
    %568 = vrot.lane.b32.xlu0 %v27, 32
    %v569 = vpop.permute.xlu0 %568
    %v572 = vsel %vm165, %v559, 0
    %v575 = vsel %vm165, %v564, 0
    %577 = vmatprep.subr.mxu0 0.0
    %578 = vmatpush1.msra.mxu0 %v569
    %579 = vmatprep.subr.mxu0 0.0
    %580 = vmatpush1.msra.mxu0 0.0
    %581 = vmatprep.subr.mxu0 0.0
    %582 = vmatpush1.msra.mxu0 0.0
    %583 = vmatprep.subr.mxu0 0.0
    %584 = vmatpush1.msra.mxu0 0.0
    %585 = vmatprep.subr.mxu0 0.0
    %586 = vmatpush1.msra.mxu0 0.0
    %587 = vmatprep.subr.mxu0 0.0
    %588 = vmatpush1.msra.mxu0 0.0
    %589 = vmatprep.subr.mxu0 0.0
    %590 = vmatpush1.msra.mxu0 0.0
    %591 = vmatprep.subr.mxu0 0.0
    %592 = vmatpush1.msra.mxu0 0.0
    %593 = vmatprep.subr.mxu0 0.0
    %594 = vmatpush1.msra.mxu0 0.0
    %595 = vmatprep.subr.mxu0 0.0
    %596 = vmatpush1.msra.mxu0 0.0
    %597 = vmatprep.subr.mxu0 0.0
    %598 = vmatpush1.msra.mxu0 0.0
    %599 = vmatprep.subr.mxu0 0.0
    %600 = vmatpush1.msra.mxu0 0.0
    %601 = vmatprep.subr.mxu0 0.0
    %602 = vmatpush1.msra.mxu0 0.0
    %603 = vmatprep.subr.mxu0 0.0
    %604 = vmatpush1.msra.mxu0 0.0
    %605 = vmatprep.subr.mxu0 0.0
    %606 = vmatpush1.msra.mxu0 0.0
    %607 = vmatprep.subr.mxu0 0.0
    %608 = vmatpush1.msra.mxu0 0.0
    %609 = vmatprep.subr.mxu0 0.0
    %610 = vmatpush1.msra.mxu0 0.0
    %611 = vmatprep.subr.mxu0 0.0
    %612 = vmatpush1.msra.mxu0 0.0
    %613 = vmatprep.subr.mxu0 0.0
    %614 = vmatpush1.msra.mxu0 0.0
    %615 = vmatprep.subr.mxu0 0.0
    %616 = vmatpush1.msra.mxu0 0.0
    %617 = vmatprep.subr.mxu0 0.0
    %618 = vmatpush1.msra.mxu0 0.0
    %619 = vmatprep.subr.mxu0 0.0
    %620 = vmatpush1.msra.mxu0 0.0
    %621 = vmatprep.subr.mxu0 0.0
    %622 = vmatpush1.msra.mxu0 0.0
    %623 = vmatprep.subr.mxu0 0.0
    %624 = vmatpush1.msra.mxu0 0.0
    %625 = vmatprep.subr.mxu0 0.0
    %626 = vmatpush1.msra.mxu0 0.0
    %627 = vmatprep.subr.mxu0 0.0
    %628 = vmatpush1.msra.mxu0 0.0
    %629 = vmatprep.subr.mxu0 0.0
    %630 = vmatpush1.msra.mxu0 0.0
    %631 = vmatprep.subr.mxu0 0.0
    %632 = vmatpush1.msra.mxu0 0.0
    %633 = vmatprep.subr.mxu0 0.0
    %634 = vmatpush1.msra.mxu0 0.0
    %635 = vmatprep.subr.mxu0 0.0
    %636 = vmatpush1.msra.mxu0 0.0
    %637 = vmatprep.subr.mxu0 0.0
    %638 = vmatpush1.msra.mxu0 0.0
    %639 = vmatprep.subr.mxu0 0.0
    %640 = vmatpush1.msra.mxu0 0.0
    %641 = vmatprep.mubr.f32.mxu0 0.0
    %642 = vmatmul.mubr.f32.gmra.mrb[0].mxu0 %v572
    %v643 = vpop.f32.mrb[0].mxu0
    %v644 = vadd.f32 0.0, %v643
    %v645 = vpop.f32.mrb[0].mxu0
    %646 = vmatprep.mubr.f32.mxu0 0.0
    %647 = vmatmul.mubr.f32.gmra.mrb[0].mxu0 %v575
    %v648 = vpop.f32.mrb[0].mxu0
    %v649 = vadd.f32 0.0, %v648
    %v650 = vpop.f32.mrb[0].mxu0
    %651 = vdwg.mxu0
    %653 = vrot.lane.b32.xlu0 %v25, 32
    %v654 = vpop.permute.xlu0 %653
    %v657 = vsel %vm165, %v355, 0
    %v660 = vsel %vm165, %v360, 0
    %662 = vmatprep.subr.mxu0 0.0
    %663 = vmatpush1.msra.mxu0 %v654
    %664 = vmatprep.subr.mxu0 0.0
    %665 = vmatpush1.msra.mxu0 0.0
    %666 = vmatprep.subr.mxu0 0.0
    %667 = vmatpush1.msra.mxu0 0.0
    %668 = vmatprep.subr.mxu0 0.0
    %669 = vmatpush1.msra.mxu0 0.0
    %670 = vmatprep.subr.mxu0 0.0
    %671 = vmatpush1.msra.mxu0 0.0
    %672 = vmatprep.subr.mxu0 0.0
    %673 = vmatpush1.msra.mxu0 0.0
    %674 = vmatprep.subr.mxu0 0.0
    %675 = vmatpush1.msra.mxu0 0.0
    %676 = vmatprep.subr.mxu0 0.0
    %677 = vmatpush1.msra.mxu0 0.0
    %678 = vmatprep.subr.mxu0 0.0
    %679 = vmatpush1.msra.mxu0 0.0
    %680 = vmatprep.subr.mxu0 0.0
    %681 = vmatpush1.msra.mxu0 0.0
    %682 = vmatprep.subr.mxu0 0.0
    %683 = vmatpush1.msra.mxu0 0.0
    %684 = vmatprep.subr.mxu0 0.0
    %685 = vmatpush1.msra.mxu0 0.0
    %686 = vmatprep.subr.mxu0 0.0
    %687 = vmatpush1.msra.mxu0 0.0
    %688 = vmatprep.subr.mxu0 0.0
    %689 = vmatpush1.msra.mxu0 0.0
    %690 = vmatprep.subr.mxu0 0.0
    %691 = vmatpush1.msra.mxu0 0.0
    %692 = vmatprep.subr.mxu0 0.0
    %693 = vmatpush1.msra.mxu0 0.0
    %694 = vmatprep.subr.mxu0 0.0
    %695 = vmatpush1.msra.mxu0 0.0
    %696 = vmatprep.subr.mxu0 0.0
    %697 = vmatpush1.msra.mxu0 0.0
    %698 = vmatprep.subr.mxu0 0.0
    %699 = vmatpush1.msra.mxu0 0.0
    %700 = vmatprep.subr.mxu0 0.0
    %701 = vmatpush1.msra.mxu0 0.0
    %702 = vmatprep.subr.mxu0 0.0
    %703 = vmatpush1.msra.mxu0 0.0
    %704 = vmatprep.subr.mxu0 0.0
    %705 = vmatpush1.msra.mxu0 0.0
    %706 = vmatprep.subr.mxu0 0.0
    %707 = vmatpush1.msra.mxu0 0.0
    %708 = vmatprep.subr.mxu0 0.0
    %709 = vmatpush1.msra.mxu0 0.0
    %710 = vmatprep.subr.mxu0 0.0
    %711 = vmatpush1.msra.mxu0 0.0
    %712 = vmatprep.subr.mxu0 0.0
    %713 = vmatpush1.msra.mxu0 0.0
    %714 = vmatprep.subr.mxu0 0.0
    %715 = vmatpush1.msra.mxu0 0.0
    %716 = vmatprep.subr.mxu0 0.0
    %717 = vmatpush1.msra.mxu0 0.0
    %718 = vmatprep.subr.mxu0 0.0
    %719 = vmatpush1.msra.mxu0 0.0
    %720 = vmatprep.subr.mxu0 0.0
    %721 = vmatpush1.msra.mxu0 0.0
    %722 = vmatprep.subr.mxu0 0.0
    %723 = vmatpush1.msra.mxu0 0.0
    %724 = vmatprep.subr.mxu0 0.0
    %725 = vmatpush1.msra.mxu0 0.0
    %726 = vmatprep.mubr.f32.mxu0 0.0
    %727 = vmatmul.mubr.f32.gmra.mrb[0].mxu0 %v657
    %v728 = vpop.f32.mrb[0].mxu0
    %v729 = vadd.f32 %v644, %v728
    %v730 = vpop.f32.mrb[0].mxu0
    %731 = vmatprep.mubr.f32.mxu0 0.0
    %732 = vmatmul.mubr.f32.gmra.mrb[0].mxu0 %v660
    %v733 = vpop.f32.mrb[0].mxu0
    %v734 = vadd.f32 %v649, %v733
    %v735 = vpop.f32.mrb[0].mxu0
    %736 = vdwg.mxu0
    %737 = vrot.lane.b32.xlu0 %v151, 112
    %v738 = vpop.permute.xlu0 %737
    %739 = vrot.lane.b32.xlu0 %v156, 112
    %v740 = vpop.permute.xlu0 %739
    %741 = vrot.lane.b32.xlu0 %v151, 80
    %v742 = vpop.permute.xlu0 %741
    %743 = vrot.lane.b32.xlu0 %v156, 80
    %v744 = vpop.permute.xlu0 %743
    %v745 = vsel %vm165, %v738, 0
    %v747 = vsel %vm165, %v740, 0
    %v749 = vsel %vm165, %v742, 0
    %v751 = vsel %vm165, %v744, 0
    %753 = vmatprep.subr.mxu0 0.0
    %754 = vmatpush1.xpose.msra.mxu0 %v749
    %755 = vmatprep.subr.mxu0 0.0
    %756 = vmatpush1.xpose.msra.mxu0 %v751
    %757 = vmatprep.subr.mxu0 0.0
    %758 = vmatpush1.xpose.msra.mxu0 0.0
    %759 = vmatprep.subr.mxu0 0.0
    %760 = vmatpush1.xpose.msra.mxu0 0.0
    %761 = vmatprep.subr.mxu0 0.0
    %762 = vmatpush1.xpose.msra.mxu0 0.0
    %763 = vmatprep.subr.mxu0 0.0
    %764 = vmatpush1.xpose.msra.mxu0 0.0
    %765 = vmatprep.subr.mxu0 0.0
    %766 = vmatpush1.xpose.msra.mxu0 0.0
    %767 = vmatprep.subr.mxu0 0.0
    %768 = vmatpush1.xpose.msra.mxu0 0.0
    %769 = vmatprep.subr.mxu0 0.0
    %770 = vmatpush1.xpose.msra.mxu0 0.0
    %771 = vmatprep.subr.mxu0 0.0
    %772 = vmatpush1.xpose.msra.mxu0 0.0
    %773 = vmatprep.subr.mxu0 0.0
    %774 = vmatpush1.xpose.msra.mxu0 0.0
    %775 = vmatprep.subr.mxu0 0.0
    %776 = vmatpush1.xpose.msra.mxu0 0.0
    %777 = vmatprep.subr.mxu0 0.0
    %778 = vmatpush1.xpose.msra.mxu0 0.0
    %779 = vmatprep.subr.mxu0 0.0
    %780 = vmatpush1.xpose.msra.mxu0 0.0
    %781 = vmatprep.subr.mxu0 0.0
    %782 = vmatpush1.xpose.msra.mxu0 0.0
    %783 = vmatprep.subr.mxu0 0.0
    %784 = vmatpush1.xpose.msra.mxu0 0.0
    %785 = vmatprep.subr.mxu0 0.0
    %786 = vmatpush1.xpose.msra.mxu0 0.0
    %787 = vmatprep.subr.mxu0 0.0
    %788 = vmatpush1.xpose.msra.mxu0 0.0
    %789 = vmatprep.subr.mxu0 0.0
    %790 = vmatpush1.xpose.msra.mxu0 0.0
    %791 = vmatprep.subr.mxu0 0.0
    %792 = vmatpush1.xpose.msra.mxu0 0.0
    %793 = vmatprep.subr.mxu0 0.0
    %794 = vmatpush1.xpose.msra.mxu0 0.0
    %795 = vmatprep.subr.mxu0 0.0
    %796 = vmatpush1.xpose.msra.mxu0 0.0
    %797 = vmatprep.subr.mxu0 0.0
    %798 = vmatpush1.xpose.msra.mxu0 0.0
    %799 = vmatprep.subr.mxu0 0.0
    %800 = vmatpush1.xpose.msra.mxu0 0.0
    %801 = vmatprep.subr.mxu0 0.0
    %802 = vmatpush1.xpose.msra.mxu0 0.0
    %803 = vmatprep.subr.mxu0 0.0
    %804 = vmatpush1.xpose.msra.mxu0 0.0
    %805 = vmatprep.subr.mxu0 0.0
    %806 = vmatpush1.xpose.msra.mxu0 0.0
    %807 = vmatprep.subr.mxu0 0.0
    %808 = vmatpush1.xpose.msra.mxu0 0.0
    %809 = vmatprep.subr.mxu0 0.0
    %810 = vmatpush1.xpose.msra.mxu0 0.0
    %811 = vmatprep.subr.mxu0 0.0
    %812 = vmatpush1.xpose.msra.mxu0 0.0
    %813 = vmatprep.subr.mxu0 0.0
    %814 = vmatpush1.xpose.msra.mxu0 0.0
    %815 = vmatprep.subr.mxu0 0.0
    %816 = vmatpush1.xpose.msra.mxu0 0.0
    %817 = vmatprep.mubr.f32.mxu0 0.0
    %818 = vmatmul.mubr.f32.gmra.mrb[0].mxu0 %v745
    %v819 = vpop.f32.mrb[0].mxu0
    %v820 = vadd.f32 0.0, %v819
    %v821 = vpop.f32.mrb[0].mxu0
    %822 = vmatprep.mubr.f32.mxu0 0.0
    %823 = vmatmul.mubr.f32.gmra.mrb[0].mxu0 %v747
    %v824 = vpop.f32.mrb[0].mxu0
    %v825 = vadd.f32 0.0, %v824
    %v826 = vpop.f32.mrb[0].mxu0
    %827 = vdwg.mxu0
    %v828 = vmul.f32 %v820, 0.35355338
    %v829 = vmul.f32 %v825, 0.35355338
    %v830 = vadd.f32 %v828, %v23
    %v831 = vadd.f32 %v829, %v24
    %v832 = vsel %vm253, %v830, -inf
    %833 = vmax.xlane.f32.xlu0 %v832
    %v834 = vpop.xlane.xlu0 %833
    %v835 = vsel %vm253, %v831, -inf
    %836 = vmax.xlane.f32.xlu0 %v835
    %v837 = vpop.xlane.xlu0 %836
    %v838 = vsub.f32 %v830, %v834
    %v839 = vsub.f32 %v831, %v837
    %v840 = vmul.f32 %v838, 1.442695
    %v841 = vpow.pop %v840
    %v842 = vmul.f32 %v839, 1.442695
    %v843 = vpow.pop %v842
    %v844 = vsel %vm253, %v841, 0.0
    %845 = vadd.xlane.f32.xlu0 %v844
    %v846 = vpop.xlane.xlu0 %845
    %v847 = vsel %vm253, %v843, 0.0
    %848 = vadd.xlane.f32.xlu0 %v847
    %v849 = vpop.xlane.xlu0 %848
    %v850 = vrcp.pop %v846
    %v851 = vrcp.pop %v849
    %v852 = vmul.f32 %v841, %v850
    %v853 = vmul.f32 %v843, %v851
    %854 = vrot.lane.b32.xlu0 %v151, 48
    %v855 = vpop.permute.xlu0 %854
    %856 = vrot.lane.b32.xlu0 %v156, 48
    %v857 = vpop.permute.xlu0 %856
    %v861 = vsel %vm253, %v852, 0
    %v864 = vsel %vm253, %v853, 0
    %866 = vmatprep.subr.mxu0 0.0
    %867 = vmatpush1.msra.mxu0 %v855
    %868 = vmatprep.subr.mxu0 0.0
    %869 = vmatpush1.msra.mxu0 %v857
    %870 = vmatprep.subr.mxu0 0.0
    %871 = vmatpush1.msra.mxu0 0.0
    %872 = vmatprep.subr.mxu0 0.0
    %873 = vmatpush1.msra.mxu0 0.0
    %874 = vmatprep.subr.mxu0 0.0
    %875 = vmatpush1.msra.mxu0 0.0
    %876 = vmatprep.subr.mxu0 0.0
    %877 = vmatpush1.msra.mxu0 0.0
    %878 = vmatprep.subr.mxu0 0.0
    %879 = vmatpush1.msra.mxu0 0.0
    %880 = vmatprep.subr.mxu0 0.0
    %881 = vmatpush1.msra.mxu0 0.0
    %882 = vmatprep.subr.mxu0 0.0
    %883 = vmatpush1.msra.mxu0 0.0
    %884 = vmatprep.subr.mxu0 0.0
    %885 = vmatpush1.msra.mxu0 0.0
    %886 = vmatprep.subr.mxu0 0.0
    %887 = vmatpush1.msra.mxu0 0.0
    %888 = vmatprep.subr.mxu0 0.0
    %889 = vmatpush1.msra.mxu0 0.0
    %890 = vmatprep.subr.mxu0 0.0
    %891 = vmatpush1.msra.mxu0 0.0
    %892 = vmatprep.subr.mxu0 0.0
    %893 = vmatpush1.msra.mxu0 0.0
    %894 = vmatprep.subr.mxu0 0.0
    %895 = vmatpush1.msra.mxu0 0.0
    %896 = vmatprep.subr.mxu0 0.0
    %897 = vmatpush1.msra.mxu0 0.0
    %898 = vmatprep.subr.mxu0 0.0
    %899 = vmatpush1.msra.mxu0 0.0
    %900 = vmatprep.subr.mxu0 0.0
    %901 = vmatpush1.msra.mxu0 0.0
    %902 = vmatprep.subr.mxu0 0.0
    %903 = vmatpush1.msra.mxu0 0.0
    %904 = vmatprep.subr.mxu0 0.0
    %905 = vmatpush1.msra.mxu0 0.0
    %906 = vmatprep.subr.mxu0 0.0
    %907 = vmatpush1.msra.mxu0 0.0
    %908 = vmatprep.subr.mxu0 0.0
    %909 = vmatpush1.msra.mxu0 0.0
    %910 = vmatprep.subr.mxu0 0.0
    %911 = vmatpush1.msra.mxu0 0.0
    %912 = vmatprep.subr.mxu0 0.0
    %913 = vmatpush1.msra.mxu0 0.0
    %914 = vmatprep.subr.mxu0 0.0
    %915 = vmatpush1.msra.mxu0 0.0
    %916 = vmatprep.subr.mxu0 0.0
    %917 = vmatpush1.msra.mxu0 0.0
    %918 = vmatprep.subr.mxu0 0.0
    %919 = vmatpush1.msra.mxu0 0.0
    %920 = vmatprep.subr.mxu0 0.0
    %921 = vmatpush1.msra.mxu0 0.0
    %922 = vmatprep.subr.mxu0 0.0
    %923 = vmatpush1.msra.mxu0 0.0
    %924 = vmatprep.subr.mxu0 0.0
    %925 = vmatpush1.msra.mxu0 0.0
    %926 = vmatprep.subr.mxu0 0.0
    %927 = vmatpush1.msra.mxu0 0.0
    %928 = vmatprep.subr.mxu0 0.0
    %929 = vmatpush1.msra.mxu0 0.0
    %930 = vmatprep.mubr.f32.mxu0 0.0
    %931 = vmatmul.mubr.f32.gmra.mrb[0].mxu0 %v861
    %v932 = vpop.f32.mrb[0].mxu0
    %v933 = vadd.f32 0.0, %v932
    %v934 = vpop.f32.mrb[0].mxu0
    %935 = vmatprep.mubr.f32.mxu0 0.0
    %936 = vmatmul.mubr.f32.gmra.mrb[0].mxu0 %v864
    %v937 = vpop.f32.mrb[0].mxu0
    %v938 = vadd.f32 0.0, %v937
    %v939 = vpop.f32.mrb[0].mxu0
    %940 = vdwg.mxu0
    %942 = vrot.lane.b32.xlu0 %v29, 32
    %v943 = vpop.permute.xlu0 %942
    %v946 = vsel %vm165, %v933, 0
    %v949 = vsel %vm165, %v938, 0
    %951 = vmatprep.subr.mxu0 0.0
    %952 = vmatpush1.msra.mxu0 %v943
    %953 = vmatprep.subr.mxu0 0.0
    %954 = vmatpush1.msra.mxu0 0.0
    %955 = vmatprep.subr.mxu0 0.0
    %956 = vmatpush1.msra.mxu0 0.0
    %957 = vmatprep.subr.mxu0 0.0
    %958 = vmatpush1.msra.mxu0 0.0
    %959 = vmatprep.subr.mxu0 0.0
    %960 = vmatpush1.msra.mxu0 0.0
    %961 = vmatprep.subr.mxu0 0.0
    %962 = vmatpush1.msra.mxu0 0.0
    %963 = vmatprep.subr.mxu0 0.0
    %964 = vmatpush1.msra.mxu0 0.0
    %965 = vmatprep.subr.mxu0 0.0
    %966 = vmatpush1.msra.mxu0 0.0
    %967 = vmatprep.subr.mxu0 0.0
    %968 = vmatpush1.msra.mxu0 0.0
    %969 = vmatprep.subr.mxu0 0.0
    %970 = vmatpush1.msra.mxu0 0.0
    %971 = vmatprep.subr.mxu0 0.0
    %972 = vmatpush1.msra.mxu0 0.0
    %973 = vmatprep.subr.mxu0 0.0
    %974 = vmatpush1.msra.mxu0 0.0
    %975 = vmatprep.subr.mxu0 0.0
    %976 = vmatpush1.msra.mxu0 0.0
    %977 = vmatprep.subr.mxu0 0.0
    %978 = vmatpush1.msra.mxu0 0.0
    %979 = vmatprep.subr.mxu0 0.0
    %980 = vmatpush1.msra.mxu0 0.0
    %981 = vmatprep.subr.mxu0 0.0
    %982 = vmatpush1.msra.mxu0 0.0
    %983 = vmatprep.subr.mxu0 0.0
    %984 = vmatpush1.msra.mxu0 0.0
    %985 = vmatprep.subr.mxu0 0.0
    %986 = vmatpush1.msra.mxu0 0.0
    %987 = vmatprep.subr.mxu0 0.0
    %988 = vmatpush1.msra.mxu0 0.0
    %989 = vmatprep.subr.mxu0 0.0
    %990 = vmatpush1.msra.mxu0 0.0
    %991 = vmatprep.subr.mxu0 0.0
    %992 = vmatpush1.msra.mxu0 0.0
    %993 = vmatprep.subr.mxu0 0.0
    %994 = vmatpush1.msra.mxu0 0.0
    %995 = vmatprep.subr.mxu0 0.0
    %996 = vmatpush1.msra.mxu0 0.0
    %997 = vmatprep.subr.mxu0 0.0
    %998 = vmatpush1.msra.mxu0 0.0
    %999 = vmatprep.subr.mxu0 0.0
    %1000 = vmatpush1.msra.mxu0 0.0
    %1001 = vmatprep.subr.mxu0 0.0
    %1002 = vmatpush1.msra.mxu0 0.0
    %1003 = vmatprep.subr.mxu0 0.0
    %1004 = vmatpush1.msra.mxu0 0.0
    %1005 = vmatprep.subr.mxu0 0.0
    %1006 = vmatpush1.msra.mxu0 0.0
    %1007 = vmatprep.subr.mxu0 0.0
    %1008 = vmatpush1.msra.mxu0 0.0
    %1009 = vmatprep.subr.mxu0 0.0
    %1010 = vmatpush1.msra.mxu0 0.0
    %1011 = vmatprep.subr.mxu0 0.0
    %1012 = vmatpush1.msra.mxu0 0.0
    %1013 = vmatprep.subr.mxu0 0.0
    %1014 = vmatpush1.msra.mxu0 0.0
    %1015 = vmatprep.mubr.f32.mxu0 0.0
    %1016 = vmatmul.mubr.f32.gmra.mrb[0].mxu0 %v946
    %v1017 = vpop.f32.mrb[0].mxu0
    %v1018 = vadd.f32 0.0, %v1017
    %v1019 = vpop.f32.mrb[0].mxu0
    %1020 = vmatprep.mubr.f32.mxu0 0.0
    %1021 = vmatmul.mubr.f32.gmra.mrb[0].mxu0 %v949
    %v1022 = vpop.f32.mrb[0].mxu0
    %v1023 = vadd.f32 0.0, %v1022
    %v1024 = vpop.f32.mrb[0].mxu0
    %1025 = vdwg.mxu0
    %v1026 = vadd.f32 %v729, %v1018
    %v1027 = vadd.f32 %v734, %v1023
    %1028 = vrot.lane.b32.xlu0 %v151, 104
    %v1029 = vpop.permute.xlu0 %1028
    %1030 = vrot.lane.b32.xlu0 %v156, 104
    %v1031 = vpop.permute.xlu0 %1030
    %1032 = vrot.lane.b32.xlu0 %v151, 72
    %v1033 = vpop.permute.xlu0 %1032
    %1034 = vrot.lane.b32.xlu0 %v156, 72
    %v1035 = vpop.permute.xlu0 %1034
    %v1036 = vsel %vm165, %v1029, 0
    %v1038 = vsel %vm165, %v1031, 0
    %v1040 = vsel %vm165, %v1033, 0
    %v1042 = vsel %vm165, %v1035, 0
    %1044 = vmatprep.subr.mxu0 0.0
    %1045 = vmatpush1.xpose.msra.mxu0 %v1040
    %1046 = vmatprep.subr.mxu0 0.0
    %1047 = vmatpush1.xpose.msra.mxu0 %v1042
    %1048 = vmatprep.subr.mxu0 0.0
    %1049 = vmatpush1.xpose.msra.mxu0 0.0
    %1050 = vmatprep.subr.mxu0 0.0
    %1051 = vmatpush1.xpose.msra.mxu0 0.0
    %1052 = vmatprep.subr.mxu0 0.0
    %1053 = vmatpush1.xpose.msra.mxu0 0.0
    %1054 = vmatprep.subr.mxu0 0.0
    %1055 = vmatpush1.xpose.msra.mxu0 0.0
    %1056 = vmatprep.subr.mxu0 0.0
    %1057 = vmatpush1.xpose.msra.mxu0 0.0
    %1058 = vmatprep.subr.mxu0 0.0
    %1059 = vmatpush1.xpose.msra.mxu0 0.0
    %1060 = vmatprep.subr.mxu0 0.0
    %1061 = vmatpush1.xpose.msra.mxu0 0.0
    %1062 = vmatprep.subr.mxu0 0.0
    %1063 = vmatpush1.xpose.msra.mxu0 0.0
    %1064 = vmatprep.subr.mxu0 0.0
    %1065 = vmatpush1.xpose.msra.mxu0 0.0
    %1066 = vmatprep.subr.mxu0 0.0
    %1067 = vmatpush1.xpose.msra.mxu0 0.0
    %1068 = vmatprep.subr.mxu0 0.0
    %1069 = vmatpush1.xpose.msra.mxu0 0.0
    %1070 = vmatprep.subr.mxu0 0.0
    %1071 = vmatpush1.xpose.msra.mxu0 0.0
    %1072 = vmatprep.subr.mxu0 0.0
    %1073 = vmatpush1.xpose.msra.mxu0 0.0
    %1074 = vmatprep.subr.mxu0 0.0
    %1075 = vmatpush1.xpose.msra.mxu0 0.0
    %1076 = vmatprep.subr.mxu0 0.0
    %1077 = vmatpush1.xpose.msra.mxu0 0.0
    %1078 = vmatprep.subr.mxu0 0.0
    %1079 = vmatpush1.xpose.msra.mxu0 0.0
    %1080 = vmatprep.subr.mxu0 0.0
    %1081 = vmatpush1.xpose.msra.mxu0 0.0
    %1082 = vmatprep.subr.mxu0 0.0
    %1083 = vmatpush1.xpose.msra.mxu0 0.0
    %1084 = vmatprep.subr.mxu0 0.0
    %1085 = vmatpush1.xpose.msra.mxu0 0.0
    %1086 = vmatprep.subr.mxu0 0.0
    %1087 = vmatpush1.xpose.msra.mxu0 0.0
    %1088 = vmatprep.subr.mxu0 0.0
    %1089 = vmatpush1.xpose.msra.mxu0 0.0
    %1090 = vmatprep.subr.mxu0 0.0
    %1091 = vmatpush1.xpose.msra.mxu0 0.0
    %1092 = vmatprep.subr.mxu0 0.0
    %1093 = vmatpush1.xpose.msra.mxu0 0.0
    %1094 = vmatprep.subr.mxu0 0.0
    %1095 = vmatpush1.xpose.msra.mxu0 0.0
    %1096 = vmatprep.subr.mxu0 0.0
    %1097 = vmatpush1.xpose.msra.mxu0 0.0
    %1098 = vmatprep.subr.mxu0 0.0
    %1099 = vmatpush1.xpose.msra.mxu0 0.0
    %1100 = vmatprep.subr.mxu0 0.0
    %1101 = vmatpush1.xpose.msra.mxu0 0.0
    %1102 = vmatprep.subr.mxu0 0.0
    %1103 = vmatpush1.xpose.msra.mxu0 0.0
    %1104 = vmatprep.subr.mxu0 0.0
    %1105 = vmatpush1.xpose.msra.mxu0 0.0
    %1106 = vmatprep.subr.mxu0 0.0
    %1107 = vmatpush1.xpose.msra.mxu0 0.0
    %1108 = vmatprep.mubr.f32.mxu0 0.0
    %1109 = vmatmul.mubr.f32.gmra.mrb[0].mxu0 %v1036
    %v1110 = vpop.f32.mrb[0].mxu0
    %v1111 = vadd.f32 0.0, %v1110
    %v1112 = vpop.f32.mrb[0].mxu0
    %1113 = vmatprep.mubr.f32.mxu0 0.0
    %1114 = vmatmul.mubr.f32.gmra.mrb[0].mxu0 %v1038
    %v1115 = vpop.f32.mrb[0].mxu0
    %v1116 = vadd.f32 0.0, %v1115
    %v1117 = vpop.f32.mrb[0].mxu0
    %1118 = vdwg.mxu0
    %v1119 = vmul.f32 %v1111, 0.35355338
    %v1120 = vmul.f32 %v1116, 0.35355338
    %v1121 = vadd.f32 %v1119, %v23
    %v1122 = vadd.f32 %v1120, %v24
    %v1123 = vsel %vm253, %v1121, -inf
    %1124 = vmax.xlane.f32.xlu0 %v1123
    %v1125 = vpop.xlane.xlu0 %1124
    %v1126 = vsel %vm253, %v1122, -inf
    %1127 = vmax.xlane.f32.xlu0 %v1126
    %v1128 = vpop.xlane.xlu0 %1127
    %v1129 = vsub.f32 %v1121, %v1125
    %v1130 = vsub.f32 %v1122, %v1128
    %v1131 = vmul.f32 %v1129, 1.442695
    %v1132 = vpow.pop %v1131
    %v1133 = vmul.f32 %v1130, 1.442695
    %v1134 = vpow.pop %v1133
    %v1135 = vsel %vm253, %v1132, 0.0
    %1136 = vadd.xlane.f32.xlu0 %v1135
    %v1137 = vpop.xlane.xlu0 %1136
    %v1138 = vsel %vm253, %v1134, 0.0
    %1139 = vadd.xlane.f32.xlu0 %v1138
    %v1140 = vpop.xlane.xlu0 %1139
    %v1141 = vrcp.pop %v1137
    %v1142 = vrcp.pop %v1140
    %v1143 = vmul.f32 %v1132, %v1141
    %v1144 = vmul.f32 %v1134, %v1142
    %1145 = vrot.lane.b32.xlu0 %v151, 40
    %v1146 = vpop.permute.xlu0 %1145
    %1147 = vrot.lane.b32.xlu0 %v156, 40
    %v1148 = vpop.permute.xlu0 %1147
    %v1152 = vsel %vm253, %v1143, 0
    %v1155 = vsel %vm253, %v1144, 0
    %1157 = vmatprep.subr.mxu0 0.0
    %1158 = vmatpush1.msra.mxu0 %v1146
    %1159 = vmatprep.subr.mxu0 0.0
    %1160 = vmatpush1.msra.mxu0 %v1148
    %1161 = vmatprep.subr.mxu0 0.0
    %1162 = vmatpush1.msra.mxu0 0.0
    %1163 = vmatprep.subr.mxu0 0.0
    %1164 = vmatpush1.msra.mxu0 0.0
    %1165 = vmatprep.subr.mxu0 0.0
    %1166 = vmatpush1.msra.mxu0 0.0
    %1167 = vmatprep.subr.mxu0 0.0
    %1168 = vmatpush1.msra.mxu0 0.0
    %1169 = vmatprep.subr.mxu0 0.0
    %1170 = vmatpush1.msra.mxu0 0.0
    %1171 = vmatprep.subr.mxu0 0.0
    %1172 = vmatpush1.msra.mxu0 0.0
    %1173 = vmatprep.subr.mxu0 0.0
    %1174 = vmatpush1.msra.mxu0 0.0
    %1175 = vmatprep.subr.mxu0 0.0
    %1176 = vmatpush1.msra.mxu0 0.0
    %1177 = vmatprep.subr.mxu0 0.0
    %1178 = vmatpush1.msra.mxu0 0.0
    %1179 = vmatprep.subr.mxu0 0.0
    %1180 = vmatpush1.msra.mxu0 0.0
    %1181 = vmatprep.subr.mxu0 0.0
    %1182 = vmatpush1.msra.mxu0 0.0
    %1183 = vmatprep.subr.mxu0 0.0
    %1184 = vmatpush1.msra.mxu0 0.0
    %1185 = vmatprep.subr.mxu0 0.0
    %1186 = vmatpush1.msra.mxu0 0.0
    %1187 = vmatprep.subr.mxu0 0.0
    %1188 = vmatpush1.msra.mxu0 0.0
    %1189 = vmatprep.subr.mxu0 0.0
    %1190 = vmatpush1.msra.mxu0 0.0
    %1191 = vmatprep.subr.mxu0 0.0
    %1192 = vmatpush1.msra.mxu0 0.0
    %1193 = vmatprep.subr.mxu0 0.0
    %1194 = vmatpush1.msra.mxu0 0.0
    %1195 = vmatprep.subr.mxu0 0.0
    %1196 = vmatpush1.msra.mxu0 0.0
    %1197 = vmatprep.subr.mxu0 0.0
    %1198 = vmatpush1.msra.mxu0 0.0
    %1199 = vmatprep.subr.mxu0 0.0
    %1200 = vmatpush1.msra.mxu0 0.0
    %1201 = vmatprep.subr.mxu0 0.0
    %1202 = vmatpush1.msra.mxu0 0.0
    %1203 = vmatprep.subr.mxu0 0.0
    %1204 = vmatpush1.msra.mxu0 0.0
    %1205 = vmatprep.subr.mxu0 0.0
    %1206 = vmatpush1.msra.mxu0 0.0
    %1207 = vmatprep.subr.mxu0 0.0
    %1208 = vmatpush1.msra.mxu0 0.0
    %1209 = vmatprep.subr.mxu0 0.0
    %1210 = vmatpush1.msra.mxu0 0.0
    %1211 = vmatprep.subr.mxu0 0.0
    %1212 = vmatpush1.msra.mxu0 0.0
    %1213 = vmatprep.subr.mxu0 0.0
    %1214 = vmatpush1.msra.mxu0 0.0
    %1215 = vmatprep.subr.mxu0 0.0
    %1216 = vmatpush1.msra.mxu0 0.0
    %1217 = vmatprep.subr.mxu0 0.0
    %1218 = vmatpush1.msra.mxu0 0.0
    %1219 = vmatprep.subr.mxu0 0.0
    %1220 = vmatpush1.msra.mxu0 0.0
    %1221 = vmatprep.mubr.f32.mxu0 0.0
    %1222 = vmatmul.mubr.f32.gmra.mrb[0].mxu0 %v1152
    %v1223 = vpop.f32.mrb[0].mxu0
    %v1224 = vadd.f32 0.0, %v1223
    %v1225 = vpop.f32.mrb[0].mxu0
    %1226 = vmatprep.mubr.f32.mxu0 0.0
    %1227 = vmatmul.mubr.f32.gmra.mrb[0].mxu0 %v1155
    %v1228 = vpop.f32.mrb[0].mxu0
    %v1229 = vadd.f32 0.0, %v1228
    %v1230 = vpop.f32.mrb[0].mxu0
    %1231 = vdwg.mxu0
    %1233 = vrot.lane.b32.xlu0 %v31, 32
    %v1234 = vpop.permute.xlu0 %1233
    %v1237 = vsel %vm165, %v1224, 0
    %v1240 = vsel %vm165, %v1229, 0
    %1242 = vmatprep.subr.mxu0 0.0
    %1243 = vmatpush1.msra.mxu0 %v1234
    %1244 = vmatprep.subr.mxu0 0.0
    %1245 = vmatpush1.msra.mxu0 0.0
    %1246 = vmatprep.subr.mxu0 0.0
    %1247 = vmatpush1.msra.mxu0 0.0
    %1248 = vmatprep.subr.mxu0 0.0
    %1249 = vmatpush1.msra.mxu0 0.0
    %1250 = vmatprep.subr.mxu0 0.0
    %1251 = vmatpush1.msra.mxu0 0.0
    %1252 = vmatprep.subr.mxu0 0.0
    %1253 = vmatpush1.msra.mxu0 0.0
    %1254 = vmatprep.subr.mxu0 0.0
    %1255 = vmatpush1.msra.mxu0 0.0
    %1256 = vmatprep.subr.mxu0 0.0
    %1257 = vmatpush1.msra.mxu0 0.0
    %1258 = vmatprep.subr.mxu0 0.0
    %1259 = vmatpush1.msra.mxu0 0.0
    %1260 = vmatprep.subr.mxu0 0.0
    %1261 = vmatpush1.msra.mxu0 0.0
    %1262 = vmatprep.subr.mxu0 0.0
    %1263 = vmatpush1.msra.mxu0 0.0
    %1264 = vmatprep.subr.mxu0 0.0
    %1265 = vmatpush1.msra.mxu0 0.0
    %1266 = vmatprep.subr.mxu0 0.0
    %1267 = vmatpush1.msra.mxu0 0.0
    %1268 = vmatprep.subr.mxu0 0.0
    %1269 = vmatpush1.msra.mxu0 0.0
    %1270 = vmatprep.subr.mxu0 0.0
    %1271 = vmatpush1.msra.mxu0 0.0
    %1272 = vmatprep.subr.mxu0 0.0
    %1273 = vmatpush1.msra.mxu0 0.0
    %1274 = vmatprep.subr.mxu0 0.0
    %1275 = vmatpush1.msra.mxu0 0.0
    %1276 = vmatprep.subr.mxu0 0.0
    %1277 = vmatpush1.msra.mxu0 0.0
    %1278 = vmatprep.subr.mxu0 0.0
    %1279 = vmatpush1.msra.mxu0 0.0
    %1280 = vmatprep.subr.mxu0 0.0
    %1281 = vmatpush1.msra.mxu0 0.0
    %1282 = vmatprep.subr.mxu0 0.0
    %1283 = vmatpush1.msra.mxu0 0.0
    %1284 = vmatprep.subr.mxu0 0.0
    %1285 = vmatpush1.msra.mxu0 0.0
    %1286 = vmatprep.subr.mxu0 0.0
    %1287 = vmatpush1.msra.mxu0 0.0
    %1288 = vmatprep.subr.mxu0 0.0
    %1289 = vmatpush1.msra.mxu0 0.0
    %1290 = vmatprep.subr.mxu0 0.0
    %1291 = vmatpush1.msra.mxu0 0.0
    %1292 = vmatprep.subr.mxu0 0.0
    %1293 = vmatpush1.msra.mxu0 0.0
    %1294 = vmatprep.subr.mxu0 0.0
    %1295 = vmatpush1.msra.mxu0 0.0
    %1296 = vmatprep.subr.mxu0 0.0
    %1297 = vmatpush1.msra.mxu0 0.0
    %1298 = vmatprep.subr.mxu0 0.0
    %1299 = vmatpush1.msra.mxu0 0.0
    %1300 = vmatprep.subr.mxu0 0.0
    %1301 = vmatpush1.msra.mxu0 0.0
    %1302 = vmatprep.subr.mxu0 0.0
    %1303 = vmatpush1.msra.mxu0 0.0
    %1304 = vmatprep.subr.mxu0 0.0
    %1305 = vmatpush1.msra.mxu0 0.0
    %1306 = vmatprep.mubr.f32.mxu0 0.0
    %1307 = vmatmul.mubr.f32.gmra.mrb[0].mxu0 %v1237
    %v1308 = vpop.f32.mrb[0].mxu0
    %v1309 = vadd.f32 0.0, %v1308
    %v1310 = vpop.f32.mrb[0].mxu0
    %1311 = vmatprep.mubr.f32.mxu0 0.0
    %1312 = vmatmul.mubr.f32.gmra.mrb[0].mxu0 %v1240
    %v1313 = vpop.f32.mrb[0].mxu0
    %v1314 = vadd.f32 0.0, %v1313
    %v1315 = vpop.f32.mrb[0].mxu0
    %1316 = vdwg.mxu0
    %v1317 = vadd.f32 %v1026, %v1309
    %v1318 = vadd.f32 %v1027, %v1314
    %v1319 = vadd.f32 %v21, %v1317
    %v1320 = vadd.f32 %v22, %v1318
    %v1321 = vlaneseq
    %v1322 = vshrl.u32 %v1321, 7
    %v1323 = vsub.s32 1, %v1322
    %v1324 = vrot.slane %v33, %v1323
    %v1325 = vadd.f32 %v1319, %v1324
    %v1326 = vadd.f32 %v1320, %v1324
    %v1327 = vsel %vm34, %v1325, 0.0
    %1328 = vadd.xlane.f32.xlu0 %v1327
    %v1329 = vpop.xlane.xlu0 %1328
    %v1330 = vsel %vm34, %v1326, 0.0
    %1331 = vadd.xlane.f32.xlu0 %v1330
    %v1332 = vpop.xlane.xlu0 %1331
    %v1333 = vmul.f32 %v1329, %v41
    %v1334 = vmul.f32 %v1332, %v41
    %v1335 = vsub.f32 %v1325, %v1333
    %v1336 = vsub.f32 %v1326, %v1334
    %v1337 = vmul.f32 %v1335, %v1335
    %v1338 = vmul.f32 %v1336, %v1336
    %v1339 = vsel %vm34, %v1337, 0.0
    %1340 = vadd.xlane.f32.xlu0 %v1339
    %v1341 = vpop.xlane.xlu0 %1340
    %v1342 = vsel %vm34, %v1338, 0.0
    %1343 = vadd.xlane.f32.xlu0 %v1342
    %v1344 = vpop.xlane.xlu0 %1343
    %v1345 = vmul.f32 %v1341, 0.032258064
    %v1346 = vmul.f32 %v1344, 0.032258064
    %v1347 = vadd.f32 %v1345, 1e-06
    %v1348 = vadd.f32 %v1346, 1e-06
    %v1349 = vrsqrt.pop %v1347
    %v1350 = vrsqrt.pop %v1348
    %v1351 = vmul.f32 %v1335, %v1349
    %v1352 = vmul.f32 %v1336, %v1350
    %v1353 = vlaneseq
    %v1354 = vshrl.u32 %v1353, 7
    %v1355 = vsub.s32 4, %v1354
    %v1356 = vrot.slane %v33, %v1355
    %v1357 = vmul.f32 %v1356, %v1351
    %v1358 = vmul.f32 %v1356, %v1352
    %v1359 = vlaneseq
    %v1360 = vshrl.u32 %v1359, 7
    %v1361 = vsub.s32 5, %v1360
    %v1362 = vrot.slane %v33, %v1361
    %v1363 = vadd.f32 %v1357, %v1362
    %v1364 = vadd.f32 %v1358, %v1362
    %v1365 = vlaneseq
    %v1366 = vshrl.u32 %v1365, 7
    %v1367 = vsub.s32 6, %v1366
    %v1368 = vrot.slane %v33, %v1367
    %v1370 = vsel %vm34, %v1363, 0
    %v1373 = vsel %vm34, %v1364, 0
    %1375 = vmatprep.subr.mxu0 0.0
    %1376 = vmatpush1.msra.mxu0 %v26
    %1377 = vmatprep.subr.mxu0 0.0
    %1378 = vmatpush1.msra.mxu0 %v28
    %1379 = vmatprep.subr.mxu0 0.0
    %1380 = vmatpush1.msra.mxu0 %v30
    %1381 = vmatprep.subr.mxu0 0.0
    %1382 = vmatpush1.msra.mxu0 %v32
    %1383 = vmatprep.subr.mxu0 0.0
    %1384 = vmatpush1.msra.mxu0 0.0
    %1385 = vmatprep.subr.mxu0 0.0
    %1386 = vmatpush1.msra.mxu0 0.0
    %1387 = vmatprep.subr.mxu0 0.0
    %1388 = vmatpush1.msra.mxu0 0.0
    %1389 = vmatprep.subr.mxu0 0.0
    %1390 = vmatpush1.msra.mxu0 0.0
    %1391 = vmatprep.subr.mxu0 0.0
    %1392 = vmatpush1.msra.mxu0 0.0
    %1393 = vmatprep.subr.mxu0 0.0
    %1394 = vmatpush1.msra.mxu0 0.0
    %1395 = vmatprep.subr.mxu0 0.0
    %1396 = vmatpush1.msra.mxu0 0.0
    %1397 = vmatprep.subr.mxu0 0.0
    %1398 = vmatpush1.msra.mxu0 0.0
    %1399 = vmatprep.subr.mxu0 0.0
    %1400 = vmatpush1.msra.mxu0 0.0
    %1401 = vmatprep.subr.mxu0 0.0
    %1402 = vmatpush1.msra.mxu0 0.0
    %1403 = vmatprep.subr.mxu0 0.0
    %1404 = vmatpush1.msra.mxu0 0.0
    %1405 = vmatprep.subr.mxu0 0.0
    %1406 = vmatpush1.msra.mxu0 0.0
    %1407 = vmatprep.subr.mxu0 0.0
    %1408 = vmatpush1.msra.mxu0 0.0
    %1409 = vmatprep.subr.mxu0 0.0
    %1410 = vmatpush1.msra.mxu0 0.0
    %1411 = vmatprep.subr.mxu0 0.0
    %1412 = vmatpush1.msra.mxu0 0.0
    %1413 = vmatprep.subr.mxu0 0.0
    %1414 = vmatpush1.msra.mxu0 0.0
    %1415 = vmatprep.subr.mxu0 0.0
    %1416 = vmatpush1.msra.mxu0 0.0
    %1417 = vmatprep.subr.mxu0 0.0
    %1418 = vmatpush1.msra.mxu0 0.0
    %1419 = vmatprep.subr.mxu0 0.0
    %1420 = vmatpush1.msra.mxu0 0.0
    %1421 = vmatprep.subr.mxu0 0.0
    %1422 = vmatpush1.msra.mxu0 0.0
    %1423 = vmatprep.subr.mxu0 0.0
    %1424 = vmatpush1.msra.mxu0 0.0
    %1425 = vmatprep.subr.mxu0 0.0
    %1426 = vmatpush1.msra.mxu0 0.0
    %1427 = vmatprep.subr.mxu0 0.0
    %1428 = vmatpush1.msra.mxu0 0.0
    %1429 = vmatprep.subr.mxu0 0.0
    %1430 = vmatpush1.msra.mxu0 0.0
    %1431 = vmatprep.subr.mxu0 0.0
    %1432 = vmatpush1.msra.mxu0 0.0
    %1433 = vmatprep.subr.mxu0 0.0
    %1434 = vmatpush1.msra.mxu0 0.0
    %1435 = vmatprep.subr.mxu0 0.0
    %1436 = vmatpush1.msra.mxu0 0.0
    %1437 = vmatprep.subr.mxu0 0.0
    %1438 = vmatpush1.msra.mxu0 0.0
    %1439 = vmatprep.mubr.f32.mxu0 0.0
    %1440 = vmatmul.mubr.f32.gmra.mrb[0].mxu0 %v1370
    %v1441 = vpop.f32.mrb[0].mxu0
    %v1442 = vadd.f32 %v1368, %v1441
    %v1443 = vpop.f32.mrb[0].mxu0
    %1444 = vmatprep.mubr.f32.mxu0 0.0
    %1445 = vmatmul.mubr.f32.gmra.mrb[0].mxu0 %v1373
    %v1446 = vpop.f32.mrb[0].mxu0
    %v1447 = vadd.f32 %v1368, %v1446
    %v1448 = vpop.f32.mrb[0].mxu0
    %1449 = vdwg.mxu0
    %v1450 = vmax.f32 %v1442, 0.0
    %v1451 = vmax.f32 %v1447, 0.0
    %v1452 = vld [vmem:[%s3] sm:$0xff]
    %v1453 = vld [vmem:[%s3 + $0x8] sm:$0xff]
    %v1454 = vld [vmem:[%s3 + $0x10] sm:$0xff]
    %v1455 = vld [vmem:[%s3 + $0x18] sm:$0xff]
    %v1456 = vld [vmem:[%s3 + $0x20] sm:$0xff]
    %v1457 = vld [vmem:[%s3 + $0x28] sm:$0xff]
    %v1458 = vld [vmem:[%s3 + $0x30] sm:$0xff]
    %v1459 = vld [vmem:[%s3 + $0x38] sm:$0xff]
    %v1460 = vlaneseq
    %v1461 = vshrl.u32 %v1460, 7
    %v1462 = vsub.s32 7, %v1461
    %v1463 = vrot.slane %v33, %v1462
    %vm1464 = vcmask 523264
    %v1466 = vsel %vm1464, %v1450, 0
    %v1469 = vsel %vm1464, %v1451, 0
    %1471 = vmatprep.subr.mxu0 0.0
    %1472 = vmatpush1.msra.mxu0 %v1452
    %1473 = vmatprep.subr.mxu0 0.0
    %1474 = vmatpush1.msra.mxu0 %v1453
    %1475 = vmatprep.subr.mxu0 0.0
    %1476 = vmatpush1.msra.mxu0 %v1454
    %1477 = vmatprep.subr.mxu0 0.0
    %1478 = vmatpush1.msra.mxu0 %v1455
    %1479 = vmatprep.subr.mxu0 0.0
    %1480 = vmatpush1.msra.mxu0 %v1456
    %1481 = vmatprep.subr.mxu0 0.0
    %1482 = vmatpush1.msra.mxu0 %v1457
    %1483 = vmatprep.subr.mxu0 0.0
    %1484 = vmatpush1.msra.mxu0 %v1458
    %1485 = vmatprep.subr.mxu0 0.0
    %1486 = vmatpush1.msra.mxu0 %v1459
    %1487 = vmatprep.subr.mxu0 0.0
    %1488 = vmatpush1.msra.mxu0 0.0
    %1489 = vmatprep.subr.mxu0 0.0
    %1490 = vmatpush1.msra.mxu0 0.0
    %1491 = vmatprep.subr.mxu0 0.0
    %1492 = vmatpush1.msra.mxu0 0.0
    %1493 = vmatprep.subr.mxu0 0.0
    %1494 = vmatpush1.msra.mxu0 0.0
    %1495 = vmatprep.subr.mxu0 0.0
    %1496 = vmatpush1.msra.mxu0 0.0
    %1497 = vmatprep.subr.mxu0 0.0
    %1498 = vmatpush1.msra.mxu0 0.0
    %1499 = vmatprep.subr.mxu0 0.0
    %1500 = vmatpush1.msra.mxu0 0.0
    %1501 = vmatprep.subr.mxu0 0.0
    %1502 = vmatpush1.msra.mxu0 0.0
    %1503 = vmatprep.subr.mxu0 0.0
    %1504 = vmatpush1.msra.mxu0 0.0
    %1505 = vmatprep.subr.mxu0 0.0
    %1506 = vmatpush1.msra.mxu0 0.0
    %1507 = vmatprep.subr.mxu0 0.0
    %1508 = vmatpush1.msra.mxu0 0.0
    %1509 = vmatprep.subr.mxu0 0.0
    %1510 = vmatpush1.msra.mxu0 0.0
    %1511 = vmatprep.subr.mxu0 0.0
    %1512 = vmatpush1.msra.mxu0 0.0
    %1513 = vmatprep.subr.mxu0 0.0
    %1514 = vmatpush1.msra.mxu0 0.0
    %1515 = vmatprep.subr.mxu0 0.0
    %1516 = vmatpush1.msra.mxu0 0.0
    %1517 = vmatprep.subr.mxu0 0.0
    %1518 = vmatpush1.msra.mxu0 0.0
    %1519 = vmatprep.subr.mxu0 0.0
    %1520 = vmatpush1.msra.mxu0 0.0
    %1521 = vmatprep.subr.mxu0 0.0
    %1522 = vmatpush1.msra.mxu0 0.0
    %1523 = vmatprep.subr.mxu0 0.0
    %1524 = vmatpush1.msra.mxu0 0.0
    %1525 = vmatprep.subr.mxu0 0.0
    %1526 = vmatpush1.msra.mxu0 0.0
    %1527 = vmatprep.subr.mxu0 0.0
    %1528 = vmatpush1.msra.mxu0 0.0
    %1529 = vmatprep.subr.mxu0 0.0
    %1530 = vmatpush1.msra.mxu0 0.0
    %1531 = vmatprep.subr.mxu0 0.0
    %1532 = vmatpush1.msra.mxu0 0.0
    %1533 = vmatprep.subr.mxu0 0.0
    %1534 = vmatpush1.msra.mxu0 0.0
    %1535 = vmatprep.mubr.f32.mxu0 0.0
    %1536 = vmatmul.mubr.f32.gmra.mrb[0].mxu0 %v1466
    %v1537 = vpop.f32.mrb[0].mxu0
    %v1538 = vadd.f32 %v1463, %v1537
    %v1539 = vpop.f32.mrb[0].mxu0
    %1540 = vmatprep.mubr.f32.mxu0 0.0
    %1541 = vmatmul.mubr.f32.gmra.mrb[0].mxu0 %v1469
    %v1542 = vpop.f32.mrb[0].mxu0
    %v1543 = vadd.f32 %v1463, %v1542
    %v1544 = vpop.f32.mrb[0].mxu0
    %1545 = vdwg.mxu0
    %v1546 = vadd.f32 %v1325, %v1538
    %v1547 = vadd.f32 %v1326, %v1543
    %1548 = vst.msk [vmem:[#allocation2] sm:$0xff] %vm34, %v1546
    %1549 = vst.msk [vmem:[#allocation2 + $0x8] sm:$0xff] %vm34, %v1547
    // Predicated region
    $region22: #{tpu_custom_call.1} parent=1 // pred_check
      _
    $region23: #{tpu_custom_call.1} parent=1 // pred_check_branch
      %1551 = sbr.rel (0) target = $region25
    $region24: #{tpu_custom_call.1} parent=1 // pred_region
      %s1553 = ssub.s32 256, 256
      %1554 = vsyncadd [#allocation3], %s1553
      %s1555 = sshll.u32 [#allocation2], 4
      %s1556 = int_to_ptr.vmem [resolvable:$true] %s1555
      %1561 = dma.vmem_to_hbm [thread:$0]  %s1556, 256, %s5, [#allocation3], 128, 128, 8
    $region25: #{tpu_custom_call.1} parent=1 // pred_fallthru
      _
    // Predicated region
    $region26: #{tpu_custom_call.1} parent=1 // pred_check
      _
    $region27: #{tpu_custom_call.1} parent=1 // pred_check_branch
      %1563 = sbr.rel (0) target = $region29
    $region28: #{tpu_custom_call.1} parent=1 // pred_region
      %1564 = dma.done [#allocation3], 256
    $region29: #{tpu_custom_call.1} parent=1 // pred_fallthru
      _
    %1565 = vsyncpa [#allocation3], 1

</llo_original>
